<compile_context>
chip_gen: v7x
topology: tpu7x:2x2x1
jax: 0.10.0
libtpu: 0.0.40
codegen_flags: <defaults>
</compile_context>

<pallas_src>
import functools

import jax
import jax.numpy as jnp
from jax import lax
from jax.experimental import pallas as pl
from jax.experimental.pallas import tpu as pltpu

NEG_INF = float(jnp.finfo(jnp.float32).min)   # torch.finfo(float32).min (reference)
NEG_MASK = -1e30                              # finite, bf16-safe "minus infinity"
R_SOFTPLUS_0 = 1.442695041                    # same constant as TimesFMAttention


def _round_up(x, m):
  return (x + m - 1) // m * m


def _build_merged_mask(paddings_f32, neg):
  """convert_paddings_to_mask + causal_mask + merge_masks -> (B, T, T) f32."""
  B, T = paddings_f32.shape
  key_mask = (paddings_f32 * neg)[:, None, :]                     # (B, 1, T)
  pad_mask = jnp.minimum(jnp.swapaxes(key_mask, 1, 2), key_mask)  # (B, T, T)
  row = lax.broadcasted_iota(jnp.int32, (T, T), 0)
  col = lax.broadcasted_iota(jnp.int32, (T, T), 1)
  causal = jnp.where(row < col, neg, 0.0).astype(jnp.float32)
  return jnp.minimum(pad_mask, causal[None])                      # (B, T, T)


def _vmem_capacity_bytes():
  """Per-core VMEM capacity; conservative fallback if the query fails."""
  try:
    info = pltpu.get_tpu_info()
    cap = getattr(info, "vmem_capacity_bytes", None)
    if cap:
      return int(cap)
  except Exception:
    pass
  return 64 << 20   # v7x per-TensorCore capacity (safe lower bound)


def _vmem_limit_bytes(block_b, T, H, I, nh, nkv, dp, qkv_out_p, maxw):
  """Generation-aware VMEM budget (includes compute intermediates)."""
  M = block_b * T
  r = nh // nkv
  w_bytes = (H * qkv_out_p + nh * dp * H + 2 * H * I) * 2 + 8 * maxw * 4
  in_blk = block_b * (T * H * 4 + T * r * T * 2 + T * 4) + w_bytes
  out_blk = block_b * T * H * 4
  interm = (M * qkv_out_p * 4 + M * (H + qkv_out_p) * 2   # qkv + bf16 casts
            + T * r * T * 14 + T * r * dp * 8             # per-group s/e/p/og
            + M * I * 6 + M * H * 16)                     # gate/ln/residuals
  est = 2 * in_blk + 2 * out_blk + interm + (6 << 20)     # + compiler scratch
  cap = _vmem_capacity_bytes()
  return int(max(32 << 20, min(est, cap - (8 << 20))))


def fused_decoder_kernel(h_ref, mask_ref, nonpad_ref, vec_ref,
                         qkv_w_ref, o_w_ref, gate_w_ref, down_w_ref,
                         out_ref, *, num_heads, num_kv_heads, head_dim_p,
                         rms_eps, ln_eps):
  """One (batch block, layer) step; activations live in the resident out block."""
  layer = pl.program_id(1)

  # Load the batch block's activations into the layer-resident output block
  # only on the first layer of this batch block.
  @pl.when(layer == 0)
  def _():
    out_ref[...] = h_ref[...]

  h3 = out_ref[...]                               # (Bb, T, H) f32
  Bb, T, H = h3.shape
  M = Bb * T
  dp = head_dim_p
  r = num_heads // num_kv_heads
  q_size = num_heads * dp
  kv_size = num_kv_heads * dp
  qkv_out = q_size + 2 * kv_size
  k_off = q_size
  v_off = q_size + kv_size

  qkv_w = qkv_w_ref[0]                            # (H, qkv_out) bf16 (Q pre-scaled)
  o_w = o_w_ref[0]                                # (q_size, H)   bf16
  gate_w = gate_w_ref[0]                          # (H, I)        bf16
  down_w = down_w_ref[0]                          # (I, H)        bf16
  I = gate_w.shape[1]

  vec = vec_ref[0]                                # (8, maxw) f32 packed vectors
  rms_w = vec[0:1, :H]
  qkv_b = vec[1:2, :qkv_out]
  o_b = vec[2:3, :H]
  ln_w = vec[3:4, :H]
  ln_b = vec[4:5, :H]
  gate_b = vec[5:6, :I]
  down_b = vec[6:7, :H]

  h = h3.reshape(M, H)                            # leading-dim collapse (cheap)

  # ---- input RMSNorm (add_unit_offset=False) -------------------------------
  ms = jnp.mean(h * h, axis=-1, keepdims=True)
  hn = (h * lax.rsqrt(ms + rms_eps) * rms_w).astype(jnp.bfloat16)

  # ---- fused QKV projection (softplus Q-scale folded into the weights) -----
  qkv = jnp.dot(hn, qkv_w, preferred_element_type=jnp.float32) + qkv_b  # (M, qkv_out)

  # ---- attention: per-batch-element, per-kv-group (no K/V replication, -----
  # ---- no full (nh, T, T) tensor, only 2D MXU matmuls) ----------------------
  attn_rows = []
  for bb in range(Bb):
    mask_b = mask_ref[bb].astype(jnp.float32)     # (T*r, T), rows ordered (t, rr)
    rows = qkv[bb * T:(bb + 1) * T]               # (T, qkv_out)
    acc = None
    for g in range(num_kv_heads):
      q2 = rows[:, g * r * dp:(g + 1) * r * dp].reshape(T * r, dp).astype(jnp.bfloat16)
      kg = rows[:, k_off + g * dp:k_off + (g + 1) * dp].astype(jnp.bfloat16)
      vg = rows[:, v_off + g * dp:v_off + (g + 1) * dp].astype(jnp.bfloat16)
      # scores: (T*r, dp) x (T, dp)^T -> (T*r, T)
      s = lax.dot_general(q2, kg, (((1,), (1,)), ((), ())),
                          preferred_element_type=jnp.float32)
      s = s + mask_b
      # explicit softmax; the divide goes to the EUP via approx reciprocal.
      m = jnp.max(s, axis=-1, keepdims=True)
      e = jnp.exp(s - m)
      den = jnp.sum(e, axis=-1, keepdims=True)
      p = (e * pl.reciprocal(den, approx=True)).astype(jnp.bfloat16)
      og = jnp.dot(p, vg, preferred_element_type=jnp.float32)      # (T*r, dp)
      og = og.reshape(T, r * dp).astype(jnp.bfloat16)
      # partial o_proj for this group's heads, accumulated in f32.
      part = jnp.dot(og, o_w[g * r * dp:(g + 1) * r * dp, :],
                     preferred_element_type=jnp.float32)           # (T, H)
      acc = part if acc is None else acc + part
    attn_rows.append(acc)
  attn = attn_rows[0] if Bb == 1 else jnp.concatenate(attn_rows, axis=0)
  h = h + attn + o_b

  # ---- MLP: LayerNorm (two-pass variance) -> gate -> relu -> down ----------
  mu = jnp.mean(h, axis=-1, keepdims=True)
  d = h - mu
  var = jnp.mean(d * d, axis=-1, keepdims=True)
  ln = (d * lax.rsqrt(var + ln_eps) * ln_w + ln_b).astype(jnp.bfloat16)
  gate = jnp.maximum(
      jnp.dot(ln, gate_w, preferred_element_type=jnp.float32) + gate_b, 0.0)
  mlp = jnp.dot(gate.astype(jnp.bfloat16), down_w,
                preferred_element_type=jnp.float32) + down_b
  nonpad = nonpad_ref[...].reshape(M, 1)          # (Bb*T, 1), 1.0 == unpadded
  out_ref[...] = (h + mlp * nonpad).reshape(Bb, T, H)


def _pack_layer_params(layer_params, num_heads, num_kv_heads, head_dim,
                       head_dim_pad):
  """Stack per-layer weights along L; fold Q scale; pad head_dim; pack vectors."""
  nh, nkv, hd = num_heads, num_kv_heads, head_dim
  qkv_w0, gate_w0 = layer_params[0][2], layer_params[0][8]
  H = qkv_w0.shape[0]
  I = gate_w0.shape[1]
  dp = _round_up(hd, head_dim_pad) if head_dim_pad else hd
  q_size, kv_size = nh * hd, nkv * hd
  qkv_out_p = (nh + 2 * nkv) * dp
  maxw = max(H, qkv_out_p, I)

  qkv_ws, o_ws, gate_ws, down_ws, vecs = [], [], [], [], []
  for (rms_w, attn_scale, qkv_w, qkv_b, o_w, o_b,
       ln_w, ln_b, gate_w, gate_b, down_w, down_b) in layer_params:
    # softplus per-head-dim scaling, folded into the Q weight columns + bias.
    scale = (R_SOFTPLUS_0 / (hd ** 0.5)) * jax.nn.softplus(
        attn_scale.astype(jnp.float32)).reshape(1, 1, hd)

    def pad3(w):
      return jnp.pad(w, ((0, 0), (0, 0), (0, dp - hd)))

    q_w = qkv_w[:, :q_size].reshape(H, nh, hd).astype(jnp.float32) * scale
    k_w = qkv_w[:, q_size:q_size + kv_size].reshape(H, nkv, hd)
    v_w = qkv_w[:, q_size + kv_size:].reshape(H, nkv, hd)
    qkv_w_p = jnp.concatenate(
        [pad3(q_w).reshape(H, nh * dp),
         pad3(k_w.astype(jnp.float32)).reshape(H, nkv * dp),
         pad3(v_w.astype(jnp.float32)).reshape(H, nkv * dp)], axis=1)

    q_b = qkv_b[:, :q_size].reshape(1, nh, hd).astype(jnp.float32) * scale
    k_b = qkv_b[:, q_size:q_size + kv_size].reshape(1, nkv, hd)
    v_b = qkv_b[:, q_size + kv_size:].reshape(1, nkv, hd)
    qkv_b_p = jnp.concatenate(
        [pad3(q_b).reshape(1, nh * dp),
         pad3(k_b.astype(jnp.float32)).reshape(1, nkv * dp),
         pad3(v_b.astype(jnp.float32)).reshape(1, nkv * dp)], axis=1)

    o_w_p = jnp.pad(o_w.astype(jnp.float32).reshape(nh, hd, H),
                    ((0, 0), (0, dp - hd), (0, 0))).reshape(nh * dp, H)

    qkv_ws.append(qkv_w_p.astype(jnp.bfloat16))
    o_ws.append(o_w_p.astype(jnp.bfloat16))
    gate_ws.append(gate_w.astype(jnp.bfloat16))
    down_ws.append(down_w.astype(jnp.bfloat16))

    def row(v):
      v = v.reshape(1, -1).astype(jnp.float32)
      return jnp.pad(v, ((0, 0), (0, maxw - v.shape[1])))

    vecs.append(jnp.concatenate(
        [row(rms_w), row(qkv_b_p), row(o_b), row(ln_w), row(ln_b),
         row(gate_b), row(down_b), jnp.zeros((1, maxw), jnp.float32)], axis=0))

  return (jnp.stack(qkv_ws), jnp.stack(o_ws), jnp.stack(gate_ws),
          jnp.stack(down_ws), jnp.stack(vecs), dp, qkv_out_p, maxw, I)


def stacked_decoder_forward(hidden_states, paddings, layer_params, *,
                            num_heads, num_kv_heads, head_dim,
                            rms_norm_eps=1e-6, ln_eps=1e-6,
                            block_b=1, head_dim_pad=128):
  """Single fused pallas_call over (batch blocks, layers)."""
  B, T, H = hidden_states.shape
  L = len(layer_params)
  assert num_heads % num_kv_heads == 0
  assert B % block_b == 0
  q_per_kv = num_heads // num_kv_heads

  h = hidden_states.astype(jnp.float32)
  pad = paddings.astype(jnp.float32)                        # (B, T)
  # Kernel mask: bf16, finite -inf substitute, pre-replicated across q_per_kv
  # so the kernel adds it directly to the (T*q_per_kv, T) score matrix.
  mask = _build_merged_mask(pad, NEG_MASK)                  # (B, T, T) f32
  mask = jnp.repeat(mask, q_per_kv, axis=1).astype(jnp.bfloat16)  # (B, T*r, T)
  nonpad = (1.0 - pad)[..., None]                           # (B, T, 1) f32

  (qkv_w, o_w, gate_w, down_w, vec_slab, dp, qkv_out_p, maxw, I) = \
      _pack_layer_params(layer_params, num_heads, num_kv_heads, head_dim,
                         head_dim_pad)

  kern = functools.partial(fused_decoder_kernel, num_heads=num_heads,
                           num_kv_heads=num_kv_heads, head_dim_p=dp,
                           rms_eps=rms_norm_eps, ln_eps=ln_eps)

  bmap = lambda b, l: (b, 0, 0)   # batch-resident blocks (fetched once per b)
  lmap = lambda b, l: (l, 0, 0)   # per-layer weight blocks (double-buffered)

  act_spec = pl.BlockSpec((block_b, T, H), bmap)
  mask_spec = pl.BlockSpec((block_b, T * q_per_kv, T), bmap)
  pad_spec = pl.BlockSpec((block_b, T, 1), bmap)
  vec_spec = pl.BlockSpec((1, 8, maxw), lmap)
  qkvw_spec = pl.BlockSpec((1, H, qkv_out_p), lmap)
  ow_spec = pl.BlockSpec((1, num_heads * dp, H), lmap)
  gatew_spec = pl.BlockSpec((1, H, I), lmap)
  downw_spec = pl.BlockSpec((1, I, H), lmap)

  vmem_limit = _vmem_limit_bytes(block_b, T, H, I, num_heads, num_kv_heads,
                                 dp, qkv_out_p, maxw)

  out = pl.pallas_call(
      kern,
      out_shape=jax.ShapeDtypeStruct((B, T, H), jnp.float32),
      grid_spec=pltpu.PrefetchScalarGridSpec(
          num_scalar_prefetch=0,
          grid=(B // block_b, L),
          in_specs=[act_spec, mask_spec, pad_spec, vec_spec,
                    qkvw_spec, ow_spec, gatew_spec, downw_spec],
          out_specs=pl.BlockSpec((block_b, T, H), bmap)),
      compiler_params=pltpu.CompilerParams(
          dimension_semantics=("parallel", "arbitrary"),
          vmem_limit_bytes=vmem_limit),
  )(h, mask, nonpad, vec_slab, qkv_w, o_w, gate_w, down_w)
  return out


def reference_forward(hidden_states, paddings, layer_params, *,
                      num_heads, num_kv_heads, head_dim,
                      rms_norm_eps=1e-6, ln_eps=1e-6):
  """Pure-JAX f32 reference of the same forward pass (for a sanity check)."""
  B, T, H = hidden_states.shape
  q_size = num_heads * head_dim
  kv_size = num_kv_heads * head_dim
  q_per_kv = num_heads // num_kv_heads
  pad = paddings.astype(jnp.float32)
  mask = _build_merged_mask(pad, NEG_INF)                   # (B, T, T)
  h = hidden_states.astype(jnp.float32)
  for (rms_w, attn_scale, qkv_w, qkv_b, o_w, o_b,
       ln_w, ln_b, gate_w, gate_b, down_w, down_b) in layer_params:
    ms = jnp.mean(h * h, axis=-1, keepdims=True)
    hn = h * lax.rsqrt(ms + rms_norm_eps) * rms_w
    qkv = hn @ qkv_w + qkv_b
    scale = (R_SOFTPLUS_0 / (head_dim ** 0.5)) * jax.nn.softplus(attn_scale)
    q = qkv[..., :q_size].reshape(B, T, num_heads, head_dim) * scale[None, None]
    k = qkv[..., q_size:q_size + kv_size].reshape(B, T, num_kv_heads, head_dim)
    v = qkv[..., q_size + kv_size:].reshape(B, T, num_kv_heads, head_dim)
    k = jnp.repeat(k, q_per_kv, axis=2)
    v = jnp.repeat(v, q_per_kv, axis=2)
    s = jnp.einsum('bqhd,bkhd->bhqk', q, k) + mask[:, None]
    p = jax.nn.softmax(s, axis=-1)
    o = jnp.einsum('bhqk,bkhd->bqhd', p, v).reshape(B, T, q_size)
    h = h + o @ o_w + o_b
    mu = jnp.mean(h, axis=-1, keepdims=True)
    var = jnp.mean((h - mu) ** 2, axis=-1, keepdims=True)
    ln = (h - mu) * lax.rsqrt(var + ln_eps) * ln_w + ln_b
    g = jnp.maximum(ln @ gate_w + gate_b, 0.0)
    h = h + (g @ down_w + down_b) * (1.0 - pad)[..., None]
  return h


def init_layer_params(key, hidden, intermediate, num_heads, num_kv_heads,
                      head_dim):
  """Deterministic synthetic parameters (stored transposed vs nn.Linear: (in, out))."""
  qkv_out = (num_heads + 2 * num_kv_heads) * head_dim
  ks = jax.random.split(key, 6)
  s = 0.02
  rms_w = jnp.ones((1, hidden), jnp.float32)
  attn_scale = jnp.zeros((1, head_dim), jnp.float32)   # softplus(0) path
  qkv_w = jax.random.normal(ks[0], (hidden, qkv_out), jnp.float32) * s
  qkv_b = jnp.zeros((1, qkv_out), jnp.float32)
  o_w = jax.random.normal(ks[1], (num_heads * head_dim, hidden), jnp.float32) * s
  o_b = jnp.zeros((1, hidden), jnp.float32)
  ln_w = jnp.ones((1, hidden), jnp.float32)
  ln_b = jnp.zeros((1, hidden), jnp.float32)
  gate_w = jax.random.normal(ks[2], (hidden, intermediate), jnp.float32) * s
  gate_b = jax.random.normal(ks[3], (1, intermediate), jnp.float32) * s
  down_w = jax.random.normal(ks[4], (intermediate, hidden), jnp.float32) * s
  down_b = jax.random.normal(ks[5], (1, hidden), jnp.float32) * s
  return (rms_w, attn_scale, qkv_w, qkv_b, o_w, o_b,
          ln_w, ln_b, gate_w, gate_b, down_w, down_b)


if __name__ == "__main__":
  B, T = 4, 16
  hidden_size, intermediate_size = 32, 64
  num_heads, num_kv_heads, head_dim = 4, 2, 16
  num_layers = 2

  key = jax.random.PRNGKey(0)
  k_h, *k_layers = jax.random.split(key, 1 + num_layers)

  hidden_states = jax.random.normal(k_h, (B, T, hidden_size), jnp.float32)
  # paddings: 1.0 marks padded timesteps (last 4 positions padded)
  paddings = jnp.concatenate(
      [jnp.zeros((B, T - 4), jnp.float32), jnp.ones((B, 4), jnp.float32)],
      axis=1)

  layer_params = [
      init_layer_params(k, hidden_size, intermediate_size, num_heads,
                        num_kv_heads, head_dim) for k in k_layers
  ]

  out = stacked_decoder_forward(hidden_states, paddings, layer_params,
                                num_heads=num_heads,
                                num_kv_heads=num_kv_heads,
                                head_dim=head_dim,
                                rms_norm_eps=1e-6,
                                ln_eps=1e-6,
                                block_b=2,          # 2 batch elems / grid step
                                head_dim_pad=128)   # MXU-aligned head_dim
  jax.block_until_ready(out)

  assert out.shape == (B, T, hidden_size)
  assert not bool(jnp.isnan(out).any()) and not bool(jnp.isinf(out).any())

  ref = reference_forward(hidden_states, paddings, layer_params,
                          num_heads=num_heads, num_kv_heads=num_kv_heads,
                          head_dim=head_dim, rms_norm_eps=1e-6, ln_eps=1e-6)
  # bf16 matmul operands / approx reciprocal in the kernel vs f32 reference.
  max_err = float(jnp.max(jnp.abs(out - ref)))
  assert max_err < 3e-2, f"max abs error vs reference too large: {max_err}"

  print("KERNEL_OK")
</pallas_src>

<mosaic_0001>
module attributes {stable_mosaic.version = 11 : i64} {
  func.func @fused_decoder_kernel(%arg0: i32, %arg1: i32, %arg2: memref<2x16x32xf32, #tpu.memory_space<vmem>>, %arg3: memref<2x32x16xbf16, #tpu.memory_space<vmem>>, %arg4: memref<2x16x1xf32, #tpu.memory_space<vmem>>, %arg5: memref<1x8x1024xf32, #tpu.memory_space<vmem>>, %arg6: memref<1x32x1024xbf16, #tpu.memory_space<vmem>>, %arg7: memref<1x512x32xbf16, #tpu.memory_space<vmem>>, %arg8: memref<1x32x64xbf16, #tpu.memory_space<vmem>>, %arg9: memref<1x64x32xbf16, #tpu.memory_space<vmem>>, %arg10: memref<2x16x32xf32, #tpu.memory_space<vmem>>) attributes {dimension_semantics = [#tpu.dimension_semantics<parallel>, #tpu.dimension_semantics<arbitrary>], iteration_bounds = array<i64: 2, 2>, scalar_prefetch = 0 : i64, scratch_operands = 0 : i64, tpu.core_type = #tpu.core_type<tc>, window_params = [{transform_indices = @transform_0, window_bounds = array<i64: 2, 16, 32>}, {transform_indices = @transform_1, window_bounds = array<i64: 2, 32, 16>}, {transform_indices = @transform_2, window_bounds = array<i64: 2, 16, 1>}, {transform_indices = @transform_3, window_bounds = array<i64: 1, 8, 1024>}, {transform_indices = @transform_4, window_bounds = array<i64: 1, 32, 1024>}, {transform_indices = @transform_5, window_bounds = array<i64: 1, 512, 32>}, {transform_indices = @transform_6, window_bounds = array<i64: 1, 32, 64>}, {transform_indices = @transform_7, window_bounds = array<i64: 1, 64, 32>}, {transform_indices = @transform_8, window_bounds = array<i64: 2, 16, 32>}]} {
    %c0_i32 = arith.constant 0 : i32
    %0 = arith.cmpi eq, %arg1, %c0_i32 : i32
    %1 = arith.extui %0 : i1 to i32
    %c0_i32_0 = arith.constant 0 : i32
    %2 = arith.cmpi ne, %1, %c0_i32_0 : i32
    scf.if %2 {
      %c0_60 = arith.constant 0 : index
      %c0_61 = arith.constant 0 : index
      %c0_62 = arith.constant 0 : index
      %189 = vector.load %arg2[%c0_60, %c0_61, %c0_62] : memref<2x16x32xf32, #tpu.memory_space<vmem>>, vector<2x16x32xf32>
      %c0_63 = arith.constant 0 : index
      %c0_64 = arith.constant 0 : index
      %c0_65 = arith.constant 0 : index
      %190 = vector.load %arg10[%c0_63, %c0_64, %c0_65] : memref<2x16x32xf32, #tpu.memory_space<vmem>>, vector<2x16x32xf32>
      tpu.vector_store %arg10[%c0_63, %c0_64, %c0_65], %189 {strides = array<i32>} : memref<2x16x32xf32, #tpu.memory_space<vmem>>, vector<2x16x32xf32>,
    } else {
    }
    %c0 = arith.constant 0 : index
    %c0_1 = arith.constant 0 : index
    %c0_2 = arith.constant 0 : index
    %3 = vector.load %arg10[%c0, %c0_1, %c0_2] : memref<2x16x32xf32, #tpu.memory_space<vmem>>, vector<2x16x32xf32>
    %c0_3 = arith.constant 0 : index
    %c0_4 = arith.constant 0 : index
    %c0_5 = arith.constant 0 : index
    %4 = vector.load %arg6[%c0_3, %c0_4, %c0_5] : memref<1x32x1024xbf16, #tpu.memory_space<vmem>>, vector<1x32x1024xbf16>
    %5 = vector.shape_cast %4 : vector<1x32x1024xbf16> to vector<32x1024xbf16>
    %c0_6 = arith.constant 0 : index
    %c0_7 = arith.constant 0 : index
    %c0_8 = arith.constant 0 : index
    %6 = vector.load %arg7[%c0_6, %c0_7, %c0_8] : memref<1x512x32xbf16, #tpu.memory_space<vmem>>, vector<1x512x32xbf16>
    %7 = vector.shape_cast %6 : vector<1x512x32xbf16> to vector<512x32xbf16>
    %c0_9 = arith.constant 0 : index
    %c0_10 = arith.constant 0 : index
    %c0_11 = arith.constant 0 : index
    %8 = vector.load %arg8[%c0_9, %c0_10, %c0_11] : memref<1x32x64xbf16, #tpu.memory_space<vmem>>, vector<1x32x64xbf16>
    %9 = vector.shape_cast %8 : vector<1x32x64xbf16> to vector<32x64xbf16>
    %c0_12 = arith.constant 0 : index
    %c0_13 = arith.constant 0 : index
    %c0_14 = arith.constant 0 : index
    %10 = vector.load %arg9[%c0_12, %c0_13, %c0_14] : memref<1x64x32xbf16, #tpu.memory_space<vmem>>, vector<1x64x32xbf16>
    %11 = vector.shape_cast %10 : vector<1x64x32xbf16> to vector<64x32xbf16>
    %c0_15 = arith.constant 0 : index
    %c0_16 = arith.constant 0 : index
    %c0_17 = arith.constant 0 : index
    %12 = vector.load %arg5[%c0_15, %c0_16, %c0_17] : memref<1x8x1024xf32, #tpu.memory_space<vmem>>, vector<1x8x1024xf32>
    %13 = vector.shape_cast %12 : vector<1x8x1024xf32> to vector<8x1024xf32>
    %14 = vector.extract_strided_slice %13 {offsets = [0, 0], sizes = [1, 32], strides = [1, 1]} : vector<8x1024xf32> to vector<1x32xf32>
    %15 = vector.extract_strided_slice %13 {offsets = [1, 0], sizes = [1, 1024], strides = [1, 1]} : vector<8x1024xf32> to vector<1x1024xf32>
    %16 = vector.extract_strided_slice %13 {offsets = [2, 0], sizes = [1, 32], strides = [1, 1]} : vector<8x1024xf32> to vector<1x32xf32>
    %17 = vector.extract_strided_slice %13 {offsets = [3, 0], sizes = [1, 32], strides = [1, 1]} : vector<8x1024xf32> to vector<1x32xf32>
    %18 = vector.extract_strided_slice %13 {offsets = [4, 0], sizes = [1, 32], strides = [1, 1]} : vector<8x1024xf32> to vector<1x32xf32>
    %19 = vector.extract_strided_slice %13 {offsets = [5, 0], sizes = [1, 64], strides = [1, 1]} : vector<8x1024xf32> to vector<1x64xf32>
    %20 = vector.extract_strided_slice %13 {offsets = [6, 0], sizes = [1, 32], strides = [1, 1]} : vector<8x1024xf32> to vector<1x32xf32>
    %21 = vector.shape_cast %3 : vector<2x16x32xf32> to vector<32x32xf32>
    %22 = arith.mulf %21, %21 : vector<32x32xf32>
    %cst = arith.constant dense<0.000000e+00> : vector<32xf32>
    %23 = vector.multi_reduction <add>, %22, %cst [1] : vector<32x32xf32> to vector<32xf32>
    %24 = vector.shape_cast %23 : vector<32xf32> to vector<32x1xf32>
    %cst_18 = arith.constant 3.200000e+01 : f32
    %25 = vector.broadcast %cst_18 : f32 to vector<32x1xf32>
    %26 = arith.divf %24, %25 : vector<32x1xf32>
    %cst_19 = arith.constant 9.99999997E-7 : f32
    %27 = vector.broadcast %cst_19 : f32 to vector<32x1xf32>
    %28 = arith.addf %26, %27 : vector<32x1xf32>
    %29 = math.rsqrt %28 : vector<32x1xf32>
    %30 = vector.broadcast %29 : vector<32x1xf32> to vector<32x32xf32>
    %31 = arith.mulf %21, %30 : vector<32x32xf32>
    %32 = vector.broadcast %14 : vector<1x32xf32> to vector<32x32xf32>
    %33 = arith.mulf %31, %32 : vector<32x32xf32>
    %34 = arith.truncf %33 : vector<32x32xf32> to vector<32x32xbf16>
    %cst_20 = arith.constant dense<0.000000e+00> : vector<32x1024xf32>
    %35 = tpu.matmul %34, %5, %cst_20 {dimension_numbers = #tpu.dot_dimension_numbers<[1], [0], [0], [1], [0, 0, 1, 1], [], []>} : vector<32x32xbf16>, vector<32x1024xbf16>, vector<32x1024xf32> -> vector<32x1024xf32>
    %36 = vector.broadcast %15 : vector<1x1024xf32> to vector<32x1024xf32>
    %37 = arith.addf %35, %36 : vector<32x1024xf32>
    %c0_21 = arith.constant 0 : index
    %c0_22 = arith.constant 0 : index
    %c0_23 = arith.constant 0 : index
    %38 = vector.load %arg3[%c0_21, %c0_22, %c0_23] : memref<2x32x16xbf16, #tpu.memory_space<vmem>>, vector<1x32x16xbf16>
    %39 = vector.shape_cast %38 : vector<1x32x16xbf16> to vector<32x16xbf16>
    %40 = arith.extf %39 : vector<32x16xbf16> to vector<32x16xf32>
    %41 = vector.extract_strided_slice %37 {offsets = [0, 0], sizes = [16, 1024], strides = [1, 1]} : vector<32x1024xf32> to vector<16x1024xf32>
    %42 = vector.extract_strided_slice %41 {offsets = [0, 0], sizes = [16, 256], strides = [1, 1]} : vector<16x1024xf32> to vector<16x256xf32>
    %43 = vector.shape_cast %42 : vector<16x256xf32> to vector<32x128xf32>
    %44 = arith.truncf %43 : vector<32x128xf32> to vector<32x128xbf16>
    %45 = vector.extract_strided_slice %41 {offsets = [0, 512], sizes = [16, 128], strides = [1, 1]} : vector<16x1024xf32> to vector<16x128xf32>
    %46 = arith.truncf %45 : vector<16x128xf32> to vector<16x128xbf16>
    %47 = vector.extract_strided_slice %41 {offsets = [0, 768], sizes = [16, 128], strides = [1, 1]} : vector<16x1024xf32> to vector<16x128xf32>
    %48 = arith.truncf %47 : vector<16x128xf32> to vector<16x128xbf16>
    %cst_24 = arith.constant dense<0.000000e+00> : vector<32x16xf32>
    %49 = tpu.matmul %44, %46, %cst_24 {dimension_numbers = #tpu.dot_dimension_numbers<[1], [1], [0], [0], [0, 0, 1, 0], [], []>} : vector<32x128xbf16>, vector<16x128xbf16>, vector<32x16xf32> -> vector<32x16xf32>
    %50 = arith.addf %49, %40 : vector<32x16xf32>
    %cst_25 = arith.constant dense<0xFF800000> : vector<32xf32>
    %51 = vector.multi_reduction <maximumf>, %50, %cst_25 [1] : vector<32x16xf32> to vector<32xf32>
    %52 = vector.shape_cast %51 : vector<32xf32> to vector<32x1xf32>
    %53 = vector.broadcast %52 : vector<32x1xf32> to vector<32x16xf32>
    %54 = arith.subf %50, %53 : vector<32x16xf32>
    %55 = math.exp %54 : vector<32x16xf32>
    %cst_26 = arith.constant dense<0.000000e+00> : vector<32xf32>
    %56 = vector.multi_reduction <add>, %55, %cst_26 [1] : vector<32x16xf32> to vector<32xf32>
    %57 = vector.shape_cast %56 : vector<32xf32> to vector<32x1xf32>
    %58 = tpu.reciprocal %57 {approx = true} : vector<32x1xf32> -> vector<32x1xf32>
    %59 = vector.broadcast %58 : vector<32x1xf32> to vector<32x16xf32>
    %60 = arith.mulf %55, %59 : vector<32x16xf32>
    %61 = arith.truncf %60 : vector<32x16xf32> to vector<32x16xbf16>
    %cst_27 = arith.constant dense<0.000000e+00> : vector<32x128xf32>
    %62 = tpu.matmul %61, %48, %cst_27 {dimension_numbers = #tpu.dot_dimension_numbers<[1], [0], [0], [1], [0, 0, 1, 1], [], []>} : vector<32x16xbf16>, vector<16x128xbf16>, vector<32x128xf32> -> vector<32x128xf32>
    %63 = vector.shape_cast %62 : vector<32x128xf32> to vector<16x256xf32>
    %64 = arith.truncf %63 : vector<16x256xf32> to vector<16x256xbf16>
    %65 = vector.extract_strided_slice %7 {offsets = [0, 0], sizes = [256, 32], strides = [1, 1]} : vector<512x32xbf16> to vector<256x32xbf16>
    %cst_28 = arith.constant dense<0.000000e+00> : vector<16x32xf32>
    %66 = tpu.matmul %64, %65, %cst_28 {dimension_numbers = #tpu.dot_dimension_numbers<[1], [0], [0], [1], [0, 0, 1, 1], [], []>} : vector<16x256xbf16>, vector<256x32xbf16>, vector<16x32xf32> -> vector<16x32xf32>
    %67 = vector.extract_strided_slice %41 {offsets = [0, 256], sizes = [16, 256], strides = [1, 1]} : vector<16x1024xf32> to vector<16x256xf32>
    %68 = vector.shape_cast %67 : vector<16x256xf32> to vector<32x128xf32>
    %69 = arith.truncf %68 : vector<32x128xf32> to vector<32x128xbf16>
    %70 = vector.extract_strided_slice %41 {offsets = [0, 640], sizes = [16, 128], strides = [1, 1]} : vector<16x1024xf32> to vector<16x128xf32>
    %71 = arith.truncf %70 : vector<16x128xf32> to vector<16x128xbf16>
    %72 = vector.extract_strided_slice %41 {offsets = [0, 896], sizes = [16, 128], strides = [1, 1]} : vector<16x1024xf32> to vector<16x128xf32>
    %73 = arith.truncf %72 : vector<16x128xf32> to vector<16x128xbf16>
    %cst_29 = arith.constant dense<0.000000e+00> : vector<32x16xf32>
    %74 = tpu.matmul %69, %71, %cst_29 {dimension_numbers = #tpu.dot_dimension_numbers<[1], [1], [0], [0], [0, 0, 1, 0], [], []>} : vector<32x128xbf16>, vector<16x128xbf16>, vector<32x16xf32> -> vector<32x16xf32>
    %75 = arith.addf %74, %40 : vector<32x16xf32>
    %cst_30 = arith.constant dense<0xFF800000> : vector<32xf32>
    %76 = vector.multi_reduction <maximumf>, %75, %cst_30 [1] : vector<32x16xf32> to vector<32xf32>
    %77 = vector.shape_cast %76 : vector<32xf32> to vector<32x1xf32>
    %78 = vector.broadcast %77 : vector<32x1xf32> to vector<32x16xf32>
    %79 = arith.subf %75, %78 : vector<32x16xf32>
    %80 = math.exp %79 : vector<32x16xf32>
    %cst_31 = arith.constant dense<0.000000e+00> : vector<32xf32>
    %81 = vector.multi_reduction <add>, %80, %cst_31 [1] : vector<32x16xf32> to vector<32xf32>
    %82 = vector.shape_cast %81 : vector<32xf32> to vector<32x1xf32>
    %83 = tpu.reciprocal %82 {approx = true} : vector<32x1xf32> -> vector<32x1xf32>
    %84 = vector.broadcast %83 : vector<32x1xf32> to vector<32x16xf32>
    %85 = arith.mulf %80, %84 : vector<32x16xf32>
    %86 = arith.truncf %85 : vector<32x16xf32> to vector<32x16xbf16>
    %cst_32 = arith.constant dense<0.000000e+00> : vector<32x128xf32>
    %87 = tpu.matmul %86, %73, %cst_32 {dimension_numbers = #tpu.dot_dimension_numbers<[1], [0], [0], [1], [0, 0, 1, 1], [], []>} : vector<32x16xbf16>, vector<16x128xbf16>, vector<32x128xf32> -> vector<32x128xf32>
    %88 = vector.shape_cast %87 : vector<32x128xf32> to vector<16x256xf32>
    %89 = arith.truncf %88 : vector<16x256xf32> to vector<16x256xbf16>
    %90 = vector.extract_strided_slice %7 {offsets = [256, 0], sizes = [256, 32], strides = [1, 1]} : vector<512x32xbf16> to vector<256x32xbf16>
    %cst_33 = arith.constant dense<0.000000e+00> : vector<16x32xf32>
    %91 = tpu.matmul %89, %90, %cst_33 {dimension_numbers = #tpu.dot_dimension_numbers<[1], [0], [0], [1], [0, 0, 1, 1], [], []>} : vector<16x256xbf16>, vector<256x32xbf16>, vector<16x32xf32> -> vector<16x32xf32>
    %92 = arith.addf %66, %91 : vector<16x32xf32>
    %c1 = arith.constant 1 : index
    %c0_34 = arith.constant 0 : index
    %c0_35 = arith.constant 0 : index
    %93 = vector.load %arg3[%c1, %c0_34, %c0_35] : memref<2x32x16xbf16, #tpu.memory_space<vmem>>, vector<1x32x16xbf16>
    %94 = vector.shape_cast %93 : vector<1x32x16xbf16> to vector<32x16xbf16>
    %95 = arith.extf %94 : vector<32x16xbf16> to vector<32x16xf32>
    %96 = vector.extract_strided_slice %37 {offsets = [16, 0], sizes = [16, 1024], strides = [1, 1]} : vector<32x1024xf32> to vector<16x1024xf32>
    %97 = vector.extract_strided_slice %96 {offsets = [0, 0], sizes = [16, 256], strides = [1, 1]} : vector<16x1024xf32> to vector<16x256xf32>
    %98 = vector.shape_cast %97 : vector<16x256xf32> to vector<32x128xf32>
    %99 = arith.truncf %98 : vector<32x128xf32> to vector<32x128xbf16>
    %100 = vector.extract_strided_slice %96 {offsets = [0, 512], sizes = [16, 128], strides = [1, 1]} : vector<16x1024xf32> to vector<16x128xf32>
    %101 = arith.truncf %100 : vector<16x128xf32> to vector<16x128xbf16>
    %102 = vector.extract_strided_slice %96 {offsets = [0, 768], sizes = [16, 128], strides = [1, 1]} : vector<16x1024xf32> to vector<16x128xf32>
    %103 = arith.truncf %102 : vector<16x128xf32> to vector<16x128xbf16>
    %cst_36 = arith.constant dense<0.000000e+00> : vector<32x16xf32>
    %104 = tpu.matmul %99, %101, %cst_36 {dimension_numbers = #tpu.dot_dimension_numbers<[1], [1], [0], [0], [0, 0, 1, 0], [], []>} : vector<32x128xbf16>, vector<16x128xbf16>, vector<32x16xf32> -> vector<32x16xf32>
    %105 = arith.addf %104, %95 : vector<32x16xf32>
    %cst_37 = arith.constant dense<0xFF800000> : vector<32xf32>
    %106 = vector.multi_reduction <maximumf>, %105, %cst_37 [1] : vector<32x16xf32> to vector<32xf32>
    %107 = vector.shape_cast %106 : vector<32xf32> to vector<32x1xf32>
    %108 = vector.broadcast %107 : vector<32x1xf32> to vector<32x16xf32>
    %109 = arith.subf %105, %108 : vector<32x16xf32>
    %110 = math.exp %109 : vector<32x16xf32>
    %cst_38 = arith.constant dense<0.000000e+00> : vector<32xf32>
    %111 = vector.multi_reduction <add>, %110, %cst_38 [1] : vector<32x16xf32> to vector<32xf32>
    %112 = vector.shape_cast %111 : vector<32xf32> to vector<32x1xf32>
    %113 = tpu.reciprocal %112 {approx = true} : vector<32x1xf32> -> vector<32x1xf32>
    %114 = vector.broadcast %113 : vector<32x1xf32> to vector<32x16xf32>
    %115 = arith.mulf %110, %114 : vector<32x16xf32>
    %116 = arith.truncf %115 : vector<32x16xf32> to vector<32x16xbf16>
    %cst_39 = arith.constant dense<0.000000e+00> : vector<32x128xf32>
    %117 = tpu.matmul %116, %103, %cst_39 {dimension_numbers = #tpu.dot_dimension_numbers<[1], [0], [0], [1], [0, 0, 1, 1], [], []>} : vector<32x16xbf16>, vector<16x128xbf16>, vector<32x128xf32> -> vector<32x128xf32>
    %118 = vector.shape_cast %117 : vector<32x128xf32> to vector<16x256xf32>
    %119 = arith.truncf %118 : vector<16x256xf32> to vector<16x256xbf16>
    %120 = vector.extract_strided_slice %7 {offsets = [0, 0], sizes = [256, 32], strides = [1, 1]} : vector<512x32xbf16> to vector<256x32xbf16>
    %cst_40 = arith.constant dense<0.000000e+00> : vector<16x32xf32>
    %121 = tpu.matmul %119, %120, %cst_40 {dimension_numbers = #tpu.dot_dimension_numbers<[1], [0], [0], [1], [0, 0, 1, 1], [], []>} : vector<16x256xbf16>, vector<256x32xbf16>, vector<16x32xf32> -> vector<16x32xf32>
    %122 = vector.extract_strided_slice %96 {offsets = [0, 256], sizes = [16, 256], strides = [1, 1]} : vector<16x1024xf32> to vector<16x256xf32>
    %123 = vector.shape_cast %122 : vector<16x256xf32> to vector<32x128xf32>
    %124 = arith.truncf %123 : vector<32x128xf32> to vector<32x128xbf16>
    %125 = vector.extract_strided_slice %96 {offsets = [0, 640], sizes = [16, 128], strides = [1, 1]} : vector<16x1024xf32> to vector<16x128xf32>
    %126 = arith.truncf %125 : vector<16x128xf32> to vector<16x128xbf16>
    %127 = vector.extract_strided_slice %96 {offsets = [0, 896], sizes = [16, 128], strides = [1, 1]} : vector<16x1024xf32> to vector<16x128xf32>
    %128 = arith.truncf %127 : vector<16x128xf32> to vector<16x128xbf16>
    %cst_41 = arith.constant dense<0.000000e+00> : vector<32x16xf32>
    %129 = tpu.matmul %124, %126, %cst_41 {dimension_numbers = #tpu.dot_dimension_numbers<[1], [1], [0], [0], [0, 0, 1, 0], [], []>} : vector<32x128xbf16>, vector<16x128xbf16>, vector<32x16xf32> -> vector<32x16xf32>
    %130 = arith.addf %129, %95 : vector<32x16xf32>
    %cst_42 = arith.constant dense<0xFF800000> : vector<32xf32>
    %131 = vector.multi_reduction <maximumf>, %130, %cst_42 [1] : vector<32x16xf32> to vector<32xf32>
    %132 = vector.shape_cast %131 : vector<32xf32> to vector<32x1xf32>
    %133 = vector.broadcast %132 : vector<32x1xf32> to vector<32x16xf32>
    %134 = arith.subf %130, %133 : vector<32x16xf32>
    %135 = math.exp %134 : vector<32x16xf32>
    %cst_43 = arith.constant dense<0.000000e+00> : vector<32xf32>
    %136 = vector.multi_reduction <add>, %135, %cst_43 [1] : vector<32x16xf32> to vector<32xf32>
    %137 = vector.shape_cast %136 : vector<32xf32> to vector<32x1xf32>
    %138 = tpu.reciprocal %137 {approx = true} : vector<32x1xf32> -> vector<32x1xf32>
    %139 = vector.broadcast %138 : vector<32x1xf32> to vector<32x16xf32>
    %140 = arith.mulf %135, %139 : vector<32x16xf32>
    %141 = arith.truncf %140 : vector<32x16xf32> to vector<32x16xbf16>
    %cst_44 = arith.constant dense<0.000000e+00> : vector<32x128xf32>
    %142 = tpu.matmul %141, %128, %cst_44 {dimension_numbers = #tpu.dot_dimension_numbers<[1], [0], [0], [1], [0, 0, 1, 1], [], []>} : vector<32x16xbf16>, vector<16x128xbf16>, vector<32x128xf32> -> vector<32x128xf32>
    %143 = vector.shape_cast %142 : vector<32x128xf32> to vector<16x256xf32>
    %144 = arith.truncf %143 : vector<16x256xf32> to vector<16x256xbf16>
    %145 = vector.extract_strided_slice %7 {offsets = [256, 0], sizes = [256, 32], strides = [1, 1]} : vector<512x32xbf16> to vector<256x32xbf16>
    %cst_45 = arith.constant dense<0.000000e+00> : vector<16x32xf32>
    %146 = tpu.matmul %144, %145, %cst_45 {dimension_numbers = #tpu.dot_dimension_numbers<[1], [0], [0], [1], [0, 0, 1, 1], [], []>} : vector<16x256xbf16>, vector<256x32xbf16>, vector<16x32xf32> -> vector<16x32xf32>
    %147 = arith.addf %121, %146 : vector<16x32xf32>
    %148 = tpu.concatenate %92, %147 in 0 : vector<16x32xf32>, vector<16x32xf32> -> vector<32x32xf32>
    %149 = arith.addf %21, %148 : vector<32x32xf32>
    %150 = vector.broadcast %16 : vector<1x32xf32> to vector<32x32xf32>
    %151 = arith.addf %149, %150 : vector<32x32xf32>
    %cst_46 = arith.constant dense<0.000000e+00> : vector<32xf32>
    %152 = vector.multi_reduction <add>, %151, %cst_46 [1] : vector<32x32xf32> to vector<32xf32>
    %153 = vector.shape_cast %152 : vector<32xf32> to vector<32x1xf32>
    %cst_47 = arith.constant 3.200000e+01 : f32
    %154 = vector.broadcast %cst_47 : f32 to vector<32x1xf32>
    %155 = arith.divf %153, %154 : vector<32x1xf32>
    %156 = vector.broadcast %155 : vector<32x1xf32> to vector<32x32xf32>
    %157 = arith.subf %151, %156 : vector<32x32xf32>
    %158 = arith.mulf %157, %157 : vector<32x32xf32>
    %cst_48 = arith.constant dense<0.000000e+00> : vector<32xf32>
    %159 = vector.multi_reduction <add>, %158, %cst_48 [1] : vector<32x32xf32> to vector<32xf32>
    %160 = vector.shape_cast %159 : vector<32xf32> to vector<32x1xf32>
    %cst_49 = arith.constant 3.200000e+01 : f32
    %161 = vector.broadcast %cst_49 : f32 to vector<32x1xf32>
    %162 = arith.divf %160, %161 : vector<32x1xf32>
    %cst_50 = arith.constant 9.99999997E-7 : f32
    %163 = vector.broadcast %cst_50 : f32 to vector<32x1xf32>
    %164 = arith.addf %162, %163 : vector<32x1xf32>
    %165 = math.rsqrt %164 : vector<32x1xf32>
    %166 = vector.broadcast %165 : vector<32x1xf32> to vector<32x32xf32>
    %167 = arith.mulf %157, %166 : vector<32x32xf32>
    %168 = vector.broadcast %17 : vector<1x32xf32> to vector<32x32xf32>
    %169 = arith.mulf %167, %168 : vector<32x32xf32>
    %170 = vector.broadcast %18 : vector<1x32xf32> to vector<32x32xf32>
    %171 = arith.addf %169, %170 : vector<32x32xf32>
    %172 = arith.truncf %171 : vector<32x32xf32> to vector<32x32xbf16>
    %cst_51 = arith.constant dense<0.000000e+00> : vector<32x64xf32>
    %173 = tpu.matmul %172, %9, %cst_51 {dimension_numbers = #tpu.dot_dimension_numbers<[1], [0], [0], [1], [0, 0, 1, 1], [], []>} : vector<32x32xbf16>, vector<32x64xbf16>, vector<32x64xf32> -> vector<32x64xf32>
    %174 = vector.broadcast %19 : vector<1x64xf32> to vector<32x64xf32>
    %175 = arith.addf %173, %174 : vector<32x64xf32>
    %cst_52 = arith.constant 0.000000e+00 : f32
    %176 = vector.broadcast %cst_52 : f32 to vector<32x64xf32>
    %177 = arith.maximumf %175, %176 : vector<32x64xf32>
    %178 = arith.truncf %177 : vector<32x64xf32> to vector<32x64xbf16>
    %cst_53 = arith.constant dense<0.000000e+00> : vector<32x32xf32>
    %179 = tpu.matmul %178, %11, %cst_53 {dimension_numbers = #tpu.dot_dimension_numbers<[1], [0], [0], [1], [0, 0, 1, 1], [], []>} : vector<32x64xbf16>, vector<64x32xbf16>, vector<32x32xf32> -> vector<32x32xf32>
    %180 = vector.broadcast %20 : vector<1x32xf32> to vector<32x32xf32>
    %181 = arith.addf %179, %180 : vector<32x32xf32>
    %c0_54 = arith.constant 0 : index
    %c0_55 = arith.constant 0 : index
    %c0_56 = arith.constant 0 : index
    %182 = vector.load %arg4[%c0_54, %c0_55, %c0_56] : memref<2x16x1xf32, #tpu.memory_space<vmem>>, vector<2x16x1xf32>
    %183 = vector.shape_cast %182 : vector<2x16x1xf32> to vector<32x1xf32>
    %184 = vector.broadcast %183 : vector<32x1xf32> to vector<32x32xf32>
    %185 = arith.mulf %181, %184 : vector<32x32xf32>
    %186 = arith.addf %151, %185 : vector<32x32xf32>
    %187 = vector.shape_cast %186 : vector<32x32xf32> to vector<2x16x32xf32>
    %c0_57 = arith.constant 0 : index
    %c0_58 = arith.constant 0 : index
    %c0_59 = arith.constant 0 : index
    %188 = vector.load %arg10[%c0_57, %c0_58, %c0_59] : memref<2x16x32xf32, #tpu.memory_space<vmem>>, vector<2x16x32xf32>
    tpu.vector_store %arg10[%c0_57, %c0_58, %c0_59], %187 {strides = array<i32>} : memref<2x16x32xf32, #tpu.memory_space<vmem>>, vector<2x16x32xf32>,
    return
  }
  func.func @transform_0(%arg0: i32, %arg1: i32) -> (i32, i32, i32) {
    %c0_i32 = arith.constant 0 : i32
    %c0_i32_0 = arith.constant 0 : i32
    %c0_i32_1 = arith.constant 0 : i32
    return %arg0, %c0_i32, %c0_i32_0 : i32, i32, i32
  }
  func.func @transform_1(%arg0: i32, %arg1: i32) -> (i32, i32, i32) {
    %c0_i32 = arith.constant 0 : i32
    %c0_i32_0 = arith.constant 0 : i32
    %c0_i32_1 = arith.constant 0 : i32
    return %arg0, %c0_i32, %c0_i32_0 : i32, i32, i32
  }
  func.func @transform_2(%arg0: i32, %arg1: i32) -> (i32, i32, i32) {
    %c0_i32 = arith.constant 0 : i32
    %c0_i32_0 = arith.constant 0 : i32
    %c0_i32_1 = arith.constant 0 : i32
    return %arg0, %c0_i32, %c0_i32_0 : i32, i32, i32
  }
  func.func @transform_3(%arg0: i32, %arg1: i32) -> (i32, i32, i32) {
    %c0_i32 = arith.constant 0 : i32
    %c0_i32_0 = arith.constant 0 : i32
    %c0_i32_1 = arith.constant 0 : i32
    return %arg1, %c0_i32, %c0_i32_0 : i32, i32, i32
  }
  func.func @transform_4(%arg0: i32, %arg1: i32) -> (i32, i32, i32) {
    %c0_i32 = arith.constant 0 : i32
    %c0_i32_0 = arith.constant 0 : i32
    %c0_i32_1 = arith.constant 0 : i32
    return %arg1, %c0_i32, %c0_i32_0 : i32, i32, i32
  }
  func.func @transform_5(%arg0: i32, %arg1: i32) -> (i32, i32, i32) {
    %c0_i32 = arith.constant 0 : i32
    %c0_i32_0 = arith.constant 0 : i32
    %c0_i32_1 = arith.constant 0 : i32
    return %arg1, %c0_i32, %c0_i32_0 : i32, i32, i32
  }
  func.func @transform_6(%arg0: i32, %arg1: i32) -> (i32, i32, i32) {
    %c0_i32 = arith.constant 0 : i32
    %c0_i32_0 = arith.constant 0 : i32
    %c0_i32_1 = arith.constant 0 : i32
    return %arg1, %c0_i32, %c0_i32_0 : i32, i32, i32
  }
  func.func @transform_7(%arg0: i32, %arg1: i32) -> (i32, i32, i32) {
    %c0_i32 = arith.constant 0 : i32
    %c0_i32_0 = arith.constant 0 : i32
    %c0_i32_1 = arith.constant 0 : i32
    return %arg1, %c0_i32, %c0_i32_0 : i32, i32, i32
  }
  func.func @transform_8(%arg0: i32, %arg1: i32) -> (i32, i32, i32) {
    %c0_i32 = arith.constant 0 : i32
    %c0_i32_0 = arith.constant 0 : i32
    %c0_i32_1 = arith.constant 0 : i32
    return %arg0, %c0_i32, %c0_i32_0 : i32, i32, i32
  }
}

</mosaic_0001>

<llo_original>
// kernel: tpu_custom_call.1
$region0: #{tpu_custom_call.1}
  #allocation0 [shape = 'u32[]', space=smem, size = 0x4, offset = 0x4, fixed_abs, tag = 'smem constant byte address 0x4 - core index']
  #allocation1 [shape = 'u32[144,128]{1,0:T(1,128)}', space=vmem, size = 0x12000, scoped, tag = 'internal scratch']
  %s0 = inlined_call_operand.vmem [shape: f32[4,16,32], index: 0, kind: input, shape index: {}]
  %s1 = inlined_call_operand.vmem [shape: bf16[4,32,16], index: 1, kind: input, shape index: {}]
  %s2 = inlined_call_operand.vmem [shape: f32[4,16,1], index: 2, kind: input, shape index: {}]
  %s3 = inlined_call_operand.vmem [shape: f32[2,8,1024], index: 3, kind: input, shape index: {}]
  %s4 = inlined_call_operand.vmem [shape: bf16[2,32,1024], index: 4, kind: input, shape index: {}]
  %s5 = inlined_call_operand.vmem [shape: bf16[2,512,32], index: 5, kind: input, shape index: {}]
  %s6 = inlined_call_operand.vmem [shape: bf16[2,32,64], index: 6, kind: input, shape index: {}]
  %s7 = inlined_call_operand.vmem [shape: bf16[2,64,32], index: 7, kind: input, shape index: {}]
  %s8 = inlined_call_operand.hbm [shape: f32[4,16,32], index: 8, kind: output, shape index: {}]
  %s9 = sld [smem:[#allocation0]]
  $region69: #{tpu_custom_call.1} parent=0
    _
  %s11 = ssub.s32 1, %s9
  %s12 = scalar_select 0, %s11, %s9
  $region1: #{tpu_custom_call.1} parent=0
    #allocation2 [shape = 'u8[32768]{0}', space=vmem, size = 0x8000, scoped, tag = 'output window, operand 0']
    #allocation3 [shape = 's32[2]{0}', space=sflag, size = 0x8, scoped, tag = 'scoped memory for tpu_custom_call.1']
    %13 = vsyncpa [#allocation3], 0
    %s14 = scalar_lea.sflag [#allocation3], 1
    %15 = vsyncpa %s14, 0
    loop: start=0, step=1, limit=6
    $region2: #{tpu_custom_call.1} parent=1 // loop_pre_header
      _
    $region3: #{tpu_custom_call.1} parent=1 // loop_header
      %s17 = sphi 0, %s21
      %p18 = scmp.ge.s32.totalorder %s17, 6
      %s24 = sphi 0, %s36
      %s25 = sphi 0, %s32
      %s26 = sphi 0, %s24
      %s27 = sphi 0, %s25
      %s28 = sphi 0, %s26
      %s29 = sphi 0, %s27
      %s39 = sphi 0, %s41
      %s42 = sphi 0, %s39
      %s43 = sphi 0, %s42
      %s59 = sphi 0, %s43
      %s65 = sphi 0, %s67
      %s68 = sphi 0, %s65
      %s69 = sphi 0, %s68
      %s85 = sphi 0, %s69
      %s91 = sphi 0, %s93
      %s94 = sphi 0, %s91
      %s95 = sphi 0, %s94
      %s111 = sphi 0, %s95
      %s117 = sphi 0, %s119
      %s120 = sphi 0, %s117
      %s121 = sphi 0, %s120
      %s137 = sphi 0, %s121
      %s143 = sphi 0, %s145
      %s146 = sphi 0, %s143
      %s147 = sphi 0, %s146
      %s163 = sphi 0, %s147
      %s169 = sphi 0, %s171
      %s172 = sphi 0, %s169
      %s173 = sphi 0, %s172
      %s189 = sphi 0, %s173
      %s195 = sphi 0, %s197
      %s198 = sphi 0, %s195
      %s199 = sphi 0, %s198
      %s215 = sphi 0, %s199
      %s221 = sphi 0, %s223
      %s224 = sphi 0, %s221
      %s225 = sphi 0, %s224
      %s241 = sphi 0, %s225
      %s247 = sphi 0, %s249
      %s250 = sphi 0, %s247
      %s251 = sphi 0, %s250
      %s267 = sphi 0, %s251
    $region4: #{tpu_custom_call.1} parent=1 // loop_header_branch
      %20 = sbr.rel (%p18) target = $region8
    $region5: #{tpu_custom_call.1} parent=1 // loop_body
      %s22 = ssub.s32 %s17, 1
      %s23 = ssub.s32 %s17, 2
      %s30 = sadd.s32 1, %s25
      %p31 = scmp.ge.s32.totalorder %s30, 2
      %s32 = scalar_select %p31, 0, %s30
      %s33 = sadd.s32 1, %s24
      %s34 = scalar_select %p31, %s33, %s24
      %p35 = scmp.ge.s32.totalorder %s34, 2
      %s36 = scalar_select %p35, 0, %s34
      %s37 = ssub.s32 %s24, %s36
      %p38 = scmp.eq.s32.totalorder %s37, 0
      %s40 = sadd.s32 %s39, 1
      %s41 = scalar_select %p38, %s39, %s40
      %p44 = pneg %p38
      %p45 = scmp.eq.s32.totalorder %s17, 3
      %p46 = por %p44, %p45
      %p47 = scmp.ne.s32.totalorder %s39, %s42
      %p48 = scmp.eq.s32.totalorder %s17, 0
      %p49 = por %p47, %p48
      %p50 = scmp.ne.s32.totalorder %s39, %s42
      %p51 = scmp.eq.s32.totalorder %s22, 3
      %p52 = por %p50, %p51
      %p53 = scmp.ne.s32.totalorder %s42, %s43
      %p54 = scmp.eq.s32.totalorder %s22, 0
      %p55 = por %p53, %p54
      %p56 = scmp.ne.s32.totalorder %s42, %s43
      %p57 = scmp.eq.s32.totalorder %s23, 3
      %p58 = por %p56, %p57
      %p60 = scmp.ne.s32.totalorder %s43, %s59
      %p61 = scmp.eq.s32.totalorder %s23, 0
      %p62 = por %p60, %p61
      %s63 = ssub.s32 %s24, %s36
      %p64 = scmp.eq.s32.totalorder %s63, 0
      %s66 = sadd.s32 %s65, 1
      %s67 = scalar_select %p64, %s65, %s66
      %p70 = pneg %p64
      %p71 = scmp.eq.s32.totalorder %s17, 3
      %p72 = por %p70, %p71
      %p73 = scmp.ne.s32.totalorder %s65, %s68
      %p74 = scmp.eq.s32.totalorder %s17, 0
      %p75 = por %p73, %p74
      %p76 = scmp.ne.s32.totalorder %s65, %s68
      %p77 = scmp.eq.s32.totalorder %s22, 3
      %p78 = por %p76, %p77
      %p79 = scmp.ne.s32.totalorder %s68, %s69
      %p80 = scmp.eq.s32.totalorder %s22, 0
      %p81 = por %p79, %p80
      %p82 = scmp.ne.s32.totalorder %s68, %s69
      %p83 = scmp.eq.s32.totalorder %s23, 3
      %p84 = por %p82, %p83
      %p86 = scmp.ne.s32.totalorder %s69, %s85
      %p87 = scmp.eq.s32.totalorder %s23, 0
      %p88 = por %p86, %p87
      %s89 = ssub.s32 %s24, %s36
      %p90 = scmp.eq.s32.totalorder %s89, 0
      %s92 = sadd.s32 %s91, 1
      %s93 = scalar_select %p90, %s91, %s92
      %p96 = pneg %p90
      %p97 = scmp.eq.s32.totalorder %s17, 3
      %p98 = por %p96, %p97
      %p99 = scmp.ne.s32.totalorder %s91, %s94
      %p100 = scmp.eq.s32.totalorder %s17, 0
      %p101 = por %p99, %p100
      %p102 = scmp.ne.s32.totalorder %s91, %s94
      %p103 = scmp.eq.s32.totalorder %s22, 3
      %p104 = por %p102, %p103
      %p105 = scmp.ne.s32.totalorder %s94, %s95
      %p106 = scmp.eq.s32.totalorder %s22, 0
      %p107 = por %p105, %p106
      %p108 = scmp.ne.s32.totalorder %s94, %s95
      %p109 = scmp.eq.s32.totalorder %s23, 3
      %p110 = por %p108, %p109
      %p112 = scmp.ne.s32.totalorder %s95, %s111
      %p113 = scmp.eq.s32.totalorder %s23, 0
      %p114 = por %p112, %p113
      %s115 = ssub.s32 %s25, %s32
      %p116 = scmp.eq.s32.totalorder %s115, 0
      %s118 = sadd.s32 %s117, 1
      %s119 = scalar_select %p116, %s117, %s118
      %p122 = pneg %p116
      %p123 = scmp.eq.s32.totalorder %s17, 3
      %p124 = por %p122, %p123
      %p125 = scmp.ne.s32.totalorder %s117, %s120
      %p126 = scmp.eq.s32.totalorder %s17, 0
      %p127 = por %p125, %p126
      %p128 = scmp.ne.s32.totalorder %s117, %s120
      %p129 = scmp.eq.s32.totalorder %s22, 3
      %p130 = por %p128, %p129
      %p131 = scmp.ne.s32.totalorder %s120, %s121
      %p132 = scmp.eq.s32.totalorder %s22, 0
      %p133 = por %p131, %p132
      %p134 = scmp.ne.s32.totalorder %s120, %s121
      %p135 = scmp.eq.s32.totalorder %s23, 3
      %p136 = por %p134, %p135
      %p138 = scmp.ne.s32.totalorder %s121, %s137
      %p139 = scmp.eq.s32.totalorder %s23, 0
      %p140 = por %p138, %p139
      %s141 = ssub.s32 %s25, %s32
      %p142 = scmp.eq.s32.totalorder %s141, 0
      %s144 = sadd.s32 %s143, 1
      %s145 = scalar_select %p142, %s143, %s144
      %p148 = pneg %p142
      %p149 = scmp.eq.s32.totalorder %s17, 3
      %p150 = por %p148, %p149
      %p151 = scmp.ne.s32.totalorder %s143, %s146
      %p152 = scmp.eq.s32.totalorder %s17, 0
      %p153 = por %p151, %p152
      %p154 = scmp.ne.s32.totalorder %s143, %s146
      %p155 = scmp.eq.s32.totalorder %s22, 3
      %p156 = por %p154, %p155
      %p157 = scmp.ne.s32.totalorder %s146, %s147
      %p158 = scmp.eq.s32.totalorder %s22, 0
      %p159 = por %p157, %p158
      %p160 = scmp.ne.s32.totalorder %s146, %s147
      %p161 = scmp.eq.s32.totalorder %s23, 3
      %p162 = por %p160, %p161
      %p164 = scmp.ne.s32.totalorder %s147, %s163
      %p165 = scmp.eq.s32.totalorder %s23, 0
      %p166 = por %p164, %p165
      %s167 = ssub.s32 %s25, %s32
      %p168 = scmp.eq.s32.totalorder %s167, 0
      %s170 = sadd.s32 %s169, 1
      %s171 = scalar_select %p168, %s169, %s170
      %p174 = pneg %p168
      %p175 = scmp.eq.s32.totalorder %s17, 3
      %p176 = por %p174, %p175
      %p177 = scmp.ne.s32.totalorder %s169, %s172
      %p178 = scmp.eq.s32.totalorder %s17, 0
      %p179 = por %p177, %p178
      %p180 = scmp.ne.s32.totalorder %s169, %s172
      %p181 = scmp.eq.s32.totalorder %s22, 3
      %p182 = por %p180, %p181
      %p183 = scmp.ne.s32.totalorder %s172, %s173
      %p184 = scmp.eq.s32.totalorder %s22, 0
      %p185 = por %p183, %p184
      %p186 = scmp.ne.s32.totalorder %s172, %s173
      %p187 = scmp.eq.s32.totalorder %s23, 3
      %p188 = por %p186, %p187
      %p190 = scmp.ne.s32.totalorder %s173, %s189
      %p191 = scmp.eq.s32.totalorder %s23, 0
      %p192 = por %p190, %p191
      %s193 = ssub.s32 %s25, %s32
      %p194 = scmp.eq.s32.totalorder %s193, 0
      %s196 = sadd.s32 %s195, 1
      %s197 = scalar_select %p194, %s195, %s196
      %p200 = pneg %p194
      %p201 = scmp.eq.s32.totalorder %s17, 3
      %p202 = por %p200, %p201
      %p203 = scmp.ne.s32.totalorder %s195, %s198
      %p204 = scmp.eq.s32.totalorder %s17, 0
      %p205 = por %p203, %p204
      %p206 = scmp.ne.s32.totalorder %s195, %s198
      %p207 = scmp.eq.s32.totalorder %s22, 3
      %p208 = por %p206, %p207
      %p209 = scmp.ne.s32.totalorder %s198, %s199
      %p210 = scmp.eq.s32.totalorder %s22, 0
      %p211 = por %p209, %p210
      %p212 = scmp.ne.s32.totalorder %s198, %s199
      %p213 = scmp.eq.s32.totalorder %s23, 3
      %p214 = por %p212, %p213
      %p216 = scmp.ne.s32.totalorder %s199, %s215
      %p217 = scmp.eq.s32.totalorder %s23, 0
      %p218 = por %p216, %p217
      %s219 = ssub.s32 %s25, %s32
      %p220 = scmp.eq.s32.totalorder %s219, 0
      %s222 = sadd.s32 %s221, 1
      %s223 = scalar_select %p220, %s221, %s222
      %p226 = pneg %p220
      %p227 = scmp.eq.s32.totalorder %s17, 3
      %p228 = por %p226, %p227
      %p229 = scmp.ne.s32.totalorder %s221, %s224
      %p230 = scmp.eq.s32.totalorder %s17, 0
      %p231 = por %p229, %p230
      %p232 = scmp.ne.s32.totalorder %s221, %s224
      %p233 = scmp.eq.s32.totalorder %s22, 3
      %p234 = por %p232, %p233
      %p235 = scmp.ne.s32.totalorder %s224, %s225
      %p236 = scmp.eq.s32.totalorder %s22, 0
      %p237 = por %p235, %p236
      %p238 = scmp.ne.s32.totalorder %s224, %s225
      %p239 = scmp.eq.s32.totalorder %s23, 3
      %p240 = por %p238, %p239
      %p242 = scmp.ne.s32.totalorder %s225, %s241
      %p243 = scmp.eq.s32.totalorder %s23, 0
      %p244 = por %p242, %p243
      %s245 = ssub.s32 %s24, %s36
      %p246 = scmp.eq.s32.totalorder %s245, 0
      %s248 = sadd.s32 %s247, 1
      %s249 = scalar_select %p246, %s247, %s248
      %p252 = pneg %p246
      %p253 = scmp.eq.s32.totalorder %s17, 3
      %p254 = por %p252, %p253
      %p255 = scmp.ne.s32.totalorder %s247, %s250
      %p256 = scmp.eq.s32.totalorder %s17, 0
      %p257 = por %p255, %p256
      %p258 = scmp.ne.s32.totalorder %s247, %s250
      %p259 = scmp.eq.s32.totalorder %s22, 3
      %p260 = por %p258, %p259
      %p261 = scmp.ne.s32.totalorder %s250, %s251
      %p262 = scmp.eq.s32.totalorder %s22, 0
      %p263 = por %p261, %p262
      %p264 = scmp.ne.s32.totalorder %s250, %s251
      %p265 = scmp.eq.s32.totalorder %s23, 3
      %p266 = por %p264, %p265
      %p268 = scmp.ne.s32.totalorder %s251, %s267
      %p269 = scmp.eq.s32.totalorder %s23, 0
      %p270 = por %p268, %p269
      %p271 = scmp.le.s32.totalorder 1, %s17
      %p272 = scmp.lt.s32.totalorder %s17, 5
      %p273 = pnand %p271, %p272
      %p274 = pneg %p273
      // Predicated region
      $region9: #{tpu_custom_call.1} parent=5 // pred_check
        _
      $region10: #{tpu_custom_call.1} parent=5 // pred_check_branch
        %276 = sbr.rel (%p273) target = $region12
      $region11: #{tpu_custom_call.1} parent=5 // pred_region
        %s277 = ssub.s32 %s17, 1
      $region12: #{tpu_custom_call.1} parent=5 // pred_fallthru
        _
      %p278 = scmp.lt.s32.totalorder %s17, 4
      // Predicated region
      $region13: #{tpu_custom_call.1} parent=5 // pred_check
        %p279 = pneg %p278
      $region14: #{tpu_custom_call.1} parent=5 // pred_check_branch
        %281 = sbr.rel (%p279) target = $region16
      $region15: #{tpu_custom_call.1} parent=5 // pred_region
        // Predicated region
        $region17: #{tpu_custom_call.1} parent=15 // pred_check
          %p282 = pneg %p49
        $region18: #{tpu_custom_call.1} parent=15 // pred_check_branch
          %284 = sbr.rel (%p282) target = $region20
        $region19: #{tpu_custom_call.1} parent=15 // pred_region
          %s285 = smul.u32 2, %s24
          %p286 = scmp.lt.s32.totalorder %s285, 3
          %s287 = scalar_select %p286, %s285, 3
          %s288 = smul.addr %s287, 2
          %s289 = smul.addr %s288, 8
          %s290 = scalar_lea.vmem %s0, %s289
          %s291 = smul.u32 2, %s24
        $region20: #{tpu_custom_call.1} parent=15 // pred_fallthru
          _
        // Predicated region
        $region21: #{tpu_custom_call.1} parent=15 // pred_check
          %p292 = pneg %p75
        $region22: #{tpu_custom_call.1} parent=15 // pred_check_branch
          %294 = sbr.rel (%p292) target = $region24
        $region23: #{tpu_custom_call.1} parent=15 // pred_region
          %s295 = smul.u32 2, %s24
          %p296 = scmp.lt.s32.totalorder %s295, 3
          %s297 = scalar_select %p296, %s295, 3
          %s298 = smul.addr %s297, 4
          %s299 = smul.addr %s298, 4
          %s300 = scalar_lea.vmem %s1, %s299
          %s301 = smul.u32 2, %s24
        $region24: #{tpu_custom_call.1} parent=15 // pred_fallthru
          _
        // Predicated region
        $region25: #{tpu_custom_call.1} parent=15 // pred_check
          %p302 = pneg %p101
        $region26: #{tpu_custom_call.1} parent=15 // pred_check_branch
          %304 = sbr.rel (%p302) target = $region28
        $region27: #{tpu_custom_call.1} parent=15 // pred_region
          %s305 = smul.u32 2, %s24
          %p306 = scmp.lt.s32.totalorder %s305, 3
          %s307 = scalar_select %p306, %s305, 3
          %s308 = smul.addr %s307, 2
          %s309 = smul.addr %s308, 8
          %s310 = scalar_lea.vmem %s2, %s309
          %s311 = smul.u32 2, %s24
        $region28: #{tpu_custom_call.1} parent=15 // pred_fallthru
          _
        // Predicated region
        $region29: #{tpu_custom_call.1} parent=15 // pred_check
          %p312 = pneg %p127
        $region30: #{tpu_custom_call.1} parent=15 // pred_check_branch
          %314 = sbr.rel (%p312) target = $region32
        $region31: #{tpu_custom_call.1} parent=15 // pred_region
          %p315 = scmp.lt.s32.totalorder %s25, 1
          %s316 = scalar_select %p315, %s25, 1
          %s317 = smul.addr %s316, 8
          %s318 = smul.addr %s317, 8
          %s319 = scalar_lea.vmem %s3, %s318
        $region32: #{tpu_custom_call.1} parent=15 // pred_fallthru
          _
        // Predicated region
        $region33: #{tpu_custom_call.1} parent=15 // pred_check
          %p320 = pneg %p153
        $region34: #{tpu_custom_call.1} parent=15 // pred_check_branch
          %322 = sbr.rel (%p320) target = $region36
        $region35: #{tpu_custom_call.1} parent=15 // pred_region
          %p323 = scmp.lt.s32.totalorder %s25, 1
          %s324 = scalar_select %p323, %s25, 1
          %s325 = smul.addr %s324, 32
          %s326 = smul.addr %s325, 4
          %s327 = scalar_lea.vmem %s4, %s326
        $region36: #{tpu_custom_call.1} parent=15 // pred_fallthru
          _
        // Predicated region
        $region37: #{tpu_custom_call.1} parent=15 // pred_check
          %p328 = pneg %p179
        $region38: #{tpu_custom_call.1} parent=15 // pred_check_branch
          %330 = sbr.rel (%p328) target = $region40
        $region39: #{tpu_custom_call.1} parent=15 // pred_region
          %p331 = scmp.lt.s32.totalorder %s25, 1
          %s332 = scalar_select %p331, %s25, 1
          %s333 = smul.addr %s332, 64
          %s334 = smul.addr %s333, 4
          %s335 = scalar_lea.vmem %s5, %s334
        $region40: #{tpu_custom_call.1} parent=15 // pred_fallthru
          _
        // Predicated region
        $region41: #{tpu_custom_call.1} parent=15 // pred_check
          %p336 = pneg %p205
        $region42: #{tpu_custom_call.1} parent=15 // pred_check_branch
          %338 = sbr.rel (%p336) target = $region44
        $region43: #{tpu_custom_call.1} parent=15 // pred_region
          %p339 = scmp.lt.s32.totalorder %s25, 1
          %s340 = scalar_select %p339, %s25, 1
          %s341 = smul.addr %s340, 4
          %s342 = smul.addr %s341, 4
          %s343 = scalar_lea.vmem %s6, %s342
        $region44: #{tpu_custom_call.1} parent=15 // pred_fallthru
          _
        // Predicated region
        $region45: #{tpu_custom_call.1} parent=15 // pred_check
          %p344 = pneg %p231
        $region46: #{tpu_custom_call.1} parent=15 // pred_check_branch
          %346 = sbr.rel (%p344) target = $region48
        $region47: #{tpu_custom_call.1} parent=15 // pred_region
          %p347 = scmp.lt.s32.totalorder %s25, 1
          %s348 = scalar_select %p347, %s25, 1
          %s349 = smul.addr %s348, 8
          %s350 = smul.addr %s349, 4
          %s351 = scalar_lea.vmem %s7, %s350
        $region48: #{tpu_custom_call.1} parent=15 // pred_fallthru
          _
      $region16: #{tpu_custom_call.1} parent=5 // pred_fallthru
        _
      %p352 = scmp.le.s32.totalorder 1, %s17
      %p353 = scmp.lt.s32.totalorder %s17, 5
      %p354 = pnand %p352, %p353
      %p355 = pneg %p354
      // Predicated region
      $region49: #{tpu_custom_call.1} parent=5 // pred_check
        _
      $region50: #{tpu_custom_call.1} parent=5 // pred_check_branch
        %357 = sbr.rel (%p354) target = $region52
      $region51: #{tpu_custom_call.1} parent=5 // pred_region
        %s358 = ssub.s32 %s17, 1
        %s359 = smul.u32 2, %s26
        %p360 = scmp.lt.s32.totalorder %s359, 3
        %s361 = scalar_select %p360, %s359, 3
        %s362 = smul.addr %s361, 2
        %s363 = smul.addr %s362, 8
        %s364 = scalar_lea.vmem %s0, %s363
        %p365 = pneg %p55
        %p366 = pneg %p52
        %s367 = smul.u32 2, %s26
        %p368 = scmp.lt.s32.totalorder %s367, 3
        %s369 = scalar_select %p368, %s367, 3
        %s370 = smul.addr %s369, 4
        %s371 = smul.addr %s370, 4
        %s372 = scalar_lea.vmem %s1, %s371
        %p373 = pneg %p81
        %p374 = pneg %p78
        %s375 = smul.u32 2, %s26
        %p376 = scmp.lt.s32.totalorder %s375, 3
        %s377 = scalar_select %p376, %s375, 3
        %s378 = smul.addr %s377, 2
        %s379 = smul.addr %s378, 8
        %s380 = scalar_lea.vmem %s2, %s379
        %p381 = pneg %p107
        %p382 = pneg %p104
        %p383 = scmp.lt.s32.totalorder %s27, 1
        %s384 = scalar_select %p383, %s27, 1
        %s385 = smul.addr %s384, 8
        %s386 = smul.addr %s385, 8
        %s387 = scalar_lea.vmem %s3, %s386
        %p388 = pneg %p133
        %p389 = pneg %p130
        %p390 = scmp.lt.s32.totalorder %s27, 1
        %s391 = scalar_select %p390, %s27, 1
        %s392 = smul.addr %s391, 32
        %s393 = smul.addr %s392, 4
        %s394 = scalar_lea.vmem %s4, %s393
        %p395 = pneg %p159
        %p396 = pneg %p156
        %p397 = scmp.lt.s32.totalorder %s27, 1
        %s398 = scalar_select %p397, %s27, 1
        %s399 = smul.addr %s398, 64
        %s400 = smul.addr %s399, 4
        %s401 = scalar_lea.vmem %s5, %s400
        %p402 = pneg %p185
        %p403 = pneg %p182
        %p404 = scmp.lt.s32.totalorder %s27, 1
        %s405 = scalar_select %p404, %s27, 1
        %s406 = smul.addr %s405, 4
        %s407 = smul.addr %s406, 4
        %s408 = scalar_lea.vmem %s6, %s407
        %p409 = pneg %p211
        %p410 = pneg %p208
        %p411 = scmp.lt.s32.totalorder %s27, 1
        %s412 = scalar_select %p411, %s27, 1
        %s413 = smul.addr %s412, 8
        %s414 = smul.addr %s413, 4
        %s415 = scalar_lea.vmem %s7, %s414
        %p416 = pneg %p237
        %p417 = pneg %p234
        %p418 = pneg %p263
        %p419 = pneg %p260
        %s420 = sand.u32 %s250, 1
        %s421 = scalar_lea.sflag [#allocation3], %s420
        %s422 = sand.u32 %s250, 1
        %s423 = smul.addr %s422, 32
        %s424 = scalar_lea.vmem [#allocation2], %s423
        %s425 = smul.u32 2, %s26
        %p426 = scmp.lt.s32.totalorder %s425, 3
        %s427 = scalar_select %p426, %s425, 3
        %s428 = smul.addr %s427, 2
        %s429 = smul.addr %s428, 8
        %s430 = scalar_lea.vmem %s0, %s429
        %s431 = smul.u32 2, %s26
        %s432 = smul.u32 2, %s26
        %p433 = scmp.lt.s32.totalorder %s432, 3
        %s434 = scalar_select %p433, %s432, 3
        %s435 = smul.addr %s434, 4
        %s436 = smul.addr %s435, 4
        %s437 = scalar_lea.vmem %s1, %s436
        %s438 = smul.u32 2, %s26
        %s439 = smul.u32 2, %s26
        %p440 = scmp.lt.s32.totalorder %s439, 3
        %s441 = scalar_select %p440, %s439, 3
        %s442 = smul.addr %s441, 2
        %s443 = smul.addr %s442, 8
        %s444 = scalar_lea.vmem %s2, %s443
        %s445 = smul.u32 2, %s26
        %p446 = scmp.lt.s32.totalorder %s27, 1
        %s447 = scalar_select %p446, %s27, 1
        %s448 = smul.addr %s447, 8
        %s449 = smul.addr %s448, 8
        %s450 = scalar_lea.vmem %s3, %s449
        %p451 = scmp.lt.s32.totalorder %s27, 1
        %s452 = scalar_select %p451, %s27, 1
        %s453 = smul.addr %s452, 32
        %s454 = smul.addr %s453, 4
        %s455 = scalar_lea.vmem %s4, %s454
        %p456 = scmp.lt.s32.totalorder %s27, 1
        %s457 = scalar_select %p456, %s27, 1
        %s458 = smul.addr %s457, 64
        %s459 = smul.addr %s458, 4
        %s460 = scalar_lea.vmem %s5, %s459
        %p461 = scmp.lt.s32.totalorder %s27, 1
        %s462 = scalar_select %p461, %s27, 1
        %s463 = smul.addr %s462, 4
        %s464 = smul.addr %s463, 4
        %s465 = scalar_lea.vmem %s6, %s464
        %p466 = scmp.lt.s32.totalorder %s27, 1
        %s467 = scalar_select %p466, %s27, 1
        %s468 = smul.addr %s467, 8
        %s469 = smul.addr %s468, 4
        %s470 = scalar_lea.vmem %s7, %s469
        %s471 = smul.u32 2, %s26
        %p473 = scmp.eq.s32.totalorder %s27, 0
        // Predicated region
        $region53: #{tpu_custom_call.1} parent=51 // pred_check
          %p474 = pneg %p473
        $region54: #{tpu_custom_call.1} parent=51 // pred_check_branch
          %476 = sbr.rel (%p474) target = $region56
        $region55: #{tpu_custom_call.1} parent=51 // pred_region
          %v477 = vld [vmem:[%s430] sm:$0xff]
          %v478 = vld [vmem:[%s430 + $0x8] sm:$0xff]
          %v479 = vld [vmem:[%s430 + $0x10] sm:$0xff]
          %v480 = vld [vmem:[%s430 + $0x18] sm:$0xff]
          %vm481 = vcmask 261120
          %482 = vst.msk [vmem:[%s424] sm:$0xff] %vm481, %v477
          %483 = vst.msk [vmem:[%s424 + $0x8] sm:$0xff] %vm481, %v478
          %484 = vst.msk [vmem:[%s424 + $0x10] sm:$0xff] %vm481, %v479
          %485 = vst.msk [vmem:[%s424 + $0x18] sm:$0xff] %vm481, %v480
        $region56: #{tpu_custom_call.1} parent=51 // pred_fallthru
          _
        %v486 = vld [vmem:[%s424] sm:$0xff]
        %v487 = vld [vmem:[%s424 + $0x8] sm:$0xff]
        %v488 = vld [vmem:[%s424 + $0x10] sm:$0xff]
        %v489 = vld [vmem:[%s424 + $0x18] sm:$0xff]
        %v490 = vld [vmem:[%s455] sm:$0xff]
        %v491 = vld [vmem:[%s455 + $0x8] sm:$0xff]
        %v492 = vld [vmem:[%s455 + $0x10] sm:$0xff]
        %v493 = vld [vmem:[%s455 + $0x18] sm:$0xff]
        %v494 = vld [vmem:[%s455 + $0x20] sm:$0xff]
        %v495 = vld [vmem:[%s455 + $0x28] sm:$0xff]
        %v496 = vld [vmem:[%s455 + $0x30] sm:$0xff]
        %v497 = vld [vmem:[%s455 + $0x38] sm:$0xff]
        %v498 = vld [vmem:[%s455 + $0x40] sm:$0xff]
        %v499 = vld [vmem:[%s455 + $0x48] sm:$0xff]
        %v500 = vld [vmem:[%s455 + $0x50] sm:$0xff]
        %v501 = vld [vmem:[%s455 + $0x58] sm:$0xff]
        %v502 = vld [vmem:[%s455 + $0x60] sm:$0xff]
        %v503 = vld [vmem:[%s455 + $0x68] sm:$0xff]
        %v504 = vld [vmem:[%s455 + $0x70] sm:$0xff]
        %v505 = vld [vmem:[%s455 + $0x78] sm:$0xff]
        %v506 = vld [vmem:[%s460] sm:$0xf]
        %v507 = vld [vmem:[%s460 + $0x4] sm:$0xf]
        %v508 = vld [vmem:[%s460 + $0x8] sm:$0xf]
        %v509 = vld [vmem:[%s460 + $0xc] sm:$0xf]
        %v510 = vld [vmem:[%s460 + $0x10] sm:$0xf]
        %v511 = vld [vmem:[%s460 + $0x14] sm:$0xf]
        %v512 = vld [vmem:[%s460 + $0x18] sm:$0xf]
        %v513 = vld [vmem:[%s460 + $0x1c] sm:$0xf]
        %v514 = vld [vmem:[%s460 + $0x20] sm:$0xf]
        %v515 = vld [vmem:[%s460 + $0x24] sm:$0xf]
        %v516 = vld [vmem:[%s460 + $0x28] sm:$0xf]
        %v517 = vld [vmem:[%s460 + $0x2c] sm:$0xf]
        %v518 = vld [vmem:[%s460 + $0x30] sm:$0xf]
        %v519 = vld [vmem:[%s460 + $0x34] sm:$0xf]
        %v520 = vld [vmem:[%s460 + $0x38] sm:$0xf]
        %v521 = vld [vmem:[%s460 + $0x3c] sm:$0xf]
        %v522 = vld [vmem:[%s460 + $0x40] sm:$0xf]
        %v523 = vld [vmem:[%s460 + $0x44] sm:$0xf]
        %v524 = vld [vmem:[%s460 + $0x48] sm:$0xf]
        %v525 = vld [vmem:[%s460 + $0x4c] sm:$0xf]
        %v526 = vld [vmem:[%s460 + $0x50] sm:$0xf]
        %v527 = vld [vmem:[%s460 + $0x54] sm:$0xf]
        %v528 = vld [vmem:[%s460 + $0x58] sm:$0xf]
        %v529 = vld [vmem:[%s460 + $0x5c] sm:$0xf]
        %v530 = vld [vmem:[%s460 + $0x60] sm:$0xf]
        %v531 = vld [vmem:[%s460 + $0x64] sm:$0xf]
        %v532 = vld [vmem:[%s460 + $0x68] sm:$0xf]
        %v533 = vld [vmem:[%s460 + $0x6c] sm:$0xf]
        %v534 = vld [vmem:[%s460 + $0x70] sm:$0xf]
        %v535 = vld [vmem:[%s460 + $0x74] sm:$0xf]
        %v536 = vld [vmem:[%s460 + $0x78] sm:$0xf]
        %v537 = vld [vmem:[%s460 + $0x7c] sm:$0xf]
        %v538 = vld [vmem:[%s460 + $0x80] sm:$0xf]
        %v539 = vld [vmem:[%s460 + $0x84] sm:$0xf]
        %v540 = vld [vmem:[%s460 + $0x88] sm:$0xf]
        %v541 = vld [vmem:[%s460 + $0x8c] sm:$0xf]
        %v542 = vld [vmem:[%s460 + $0x90] sm:$0xf]
        %v543 = vld [vmem:[%s460 + $0x94] sm:$0xf]
        %v544 = vld [vmem:[%s460 + $0x98] sm:$0xf]
        %v545 = vld [vmem:[%s460 + $0x9c] sm:$0xf]
        %v546 = vld [vmem:[%s460 + $0xa0] sm:$0xf]
        %v547 = vld [vmem:[%s460 + $0xa4] sm:$0xf]
        %v548 = vld [vmem:[%s460 + $0xa8] sm:$0xf]
        %v549 = vld [vmem:[%s460 + $0xac] sm:$0xf]
        %v550 = vld [vmem:[%s460 + $0xb0] sm:$0xf]
        %v551 = vld [vmem:[%s460 + $0xb4] sm:$0xf]
        %v552 = vld [vmem:[%s460 + $0xb8] sm:$0xf]
        %v553 = vld [vmem:[%s460 + $0xbc] sm:$0xf]
        %v554 = vld [vmem:[%s460 + $0xc0] sm:$0xf]
        %v555 = vld [vmem:[%s460 + $0xc4] sm:$0xf]
        %v556 = vld [vmem:[%s460 + $0xc8] sm:$0xf]
        %v557 = vld [vmem:[%s460 + $0xcc] sm:$0xf]
        %v558 = vld [vmem:[%s460 + $0xd0] sm:$0xf]
        %v559 = vld [vmem:[%s460 + $0xd4] sm:$0xf]
        %v560 = vld [vmem:[%s460 + $0xd8] sm:$0xf]
        %v561 = vld [vmem:[%s460 + $0xdc] sm:$0xf]
        %v562 = vld [vmem:[%s460 + $0xe0] sm:$0xf]
        %v563 = vld [vmem:[%s460 + $0xe4] sm:$0xf]
        %v564 = vld [vmem:[%s460 + $0xe8] sm:$0xf]
        %v565 = vld [vmem:[%s460 + $0xec] sm:$0xf]
        %v566 = vld [vmem:[%s460 + $0xf0] sm:$0xf]
        %v567 = vld [vmem:[%s460 + $0xf4] sm:$0xf]
        %v568 = vld [vmem:[%s460 + $0xf8] sm:$0xf]
        %v569 = vld [vmem:[%s460 + $0xfc] sm:$0xf]
        %v570 = vld [vmem:[%s465] sm:$0xf]
        %v571 = vld [vmem:[%s465 + $0x4] sm:$0xf]
        %v572 = vld [vmem:[%s465 + $0x8] sm:$0xf]
        %v573 = vld [vmem:[%s465 + $0xc] sm:$0xf]
        %v574 = vld [vmem:[%s470] sm:$0xf]
        %v575 = vld [vmem:[%s470 + $0x4] sm:$0xf]
        %v576 = vld [vmem:[%s470 + $0x8] sm:$0xf]
        %v577 = vld [vmem:[%s470 + $0xc] sm:$0xf]
        %v578 = vld [vmem:[%s470 + $0x10] sm:$0xf]
        %v579 = vld [vmem:[%s470 + $0x14] sm:$0xf]
        %v580 = vld [vmem:[%s470 + $0x18] sm:$0xf]
        %v581 = vld [vmem:[%s470 + $0x1c] sm:$0xf]
        %v582 = vld [vmem:[%s450] sm:$0xff]
        %v583 = vld [vmem:[%s450 + $0x8] sm:$0xff]
        %v584 = vld [vmem:[%s450 + $0x10] sm:$0xff]
        %v585 = vld [vmem:[%s450 + $0x18] sm:$0xff]
        %v586 = vld [vmem:[%s450 + $0x20] sm:$0xff]
        %v587 = vld [vmem:[%s450 + $0x28] sm:$0xff]
        %v588 = vld [vmem:[%s450 + $0x30] sm:$0xff]
        %v589 = vld [vmem:[%s450 + $0x38] sm:$0xff]
        %v590 = vmul.f32 %v486, %v486
        %v591 = vmul.f32 %v487, %v487
        %v592 = vmul.f32 %v488, %v488
        %v593 = vmul.f32 %v489, %v489
        %vm594 = vcmask 261120
        %v595 = vsel %vm594, %v590, 0.0
        %596 = vadd.xlane.f32.xlu0 %v595
        %v597 = vpop.xlane.xlu0 %596
        %v598 = vsel %vm594, %v591, 0.0
        %599 = vadd.xlane.f32.xlu0 %v598
        %v600 = vpop.xlane.xlu0 %599
        %v601 = vsel %vm594, %v592, 0.0
        %602 = vadd.xlane.f32.xlu0 %v601
        %v603 = vpop.xlane.xlu0 %602
        %v604 = vsel %vm594, %v593, 0.0
        %605 = vadd.xlane.f32.xlu0 %v604
        %v606 = vpop.xlane.xlu0 %605
        %v607 = vrcp.pop 32.0
        %v608 = vmul.f32 %v597, %v607
        %v609 = vmul.f32 %v600, %v607
        %v610 = vmul.f32 %v603, %v607
        %v611 = vmul.f32 %v606, %v607
        %v612 = vadd.f32 %v608, 1e-06
        %v613 = vadd.f32 %v609, 1e-06
        %v614 = vadd.f32 %v610, 1e-06
        %v615 = vadd.f32 %v611, 1e-06
        %v616 = vrsqrt.pop %v612
        %v617 = vrsqrt.pop %v613
        %v618 = vrsqrt.pop %v614
        %v619 = vrsqrt.pop %v615
        %v620 = vmul.f32 %v486, %v616
        %v621 = vmul.f32 %v487, %v617
        %v622 = vmul.f32 %v488, %v618
        %v623 = vmul.f32 %v489, %v619
        %v624 = vlaneseq
        %v625 = vshrl.u32 %v624, 7
        %v626 = vsub.s32 0, %v625
        %v627 = vrot.slane %v582, %v626
        %v628 = vmul.f32 %v620, %v627
        %v629 = vmul.f32 %v621, %v627
        %v630 = vmul.f32 %v622, %v627
        %v631 = vmul.f32 %v623, %v627
        %v632 = vpack.c.bf16 %v629, %v628
        %v633 = vpack.c.bf16 %v631, %v630
        %v634 = vlaneseq
        %v635 = vshrl.u32 %v634, 7
        %v636 = vsub.s32 1, %v635
        %v637 = vrot.slane %v582, %v636
        %v638 = vlaneseq
        %v639 = vshrl.u32 %v638, 7
        %v640 = vsub.s32 1, %v639
        %v641 = vrot.slane %v583, %v640
        %v642 = vlaneseq
        %v643 = vshrl.u32 %v642, 7
        %v644 = vsub.s32 1, %v643
        %v645 = vrot.slane %v584, %v644
        %v646 = vlaneseq
        %v647 = vshrl.u32 %v646, 7
        %v648 = vsub.s32 1, %v647
        %v649 = vrot.slane %v585, %v648
        %v650 = vlaneseq
        %v651 = vshrl.u32 %v650, 7
        %v652 = vsub.s32 1, %v651
        %v653 = vrot.slane %v586, %v652
        %v654 = vlaneseq
        %v655 = vshrl.u32 %v654, 7
        %v656 = vsub.s32 1, %v655
        %v657 = vrot.slane %v587, %v656
        %v658 = vlaneseq
        %v659 = vshrl.u32 %v658, 7
        %v660 = vsub.s32 1, %v659
        %v661 = vrot.slane %v588, %v660
        %v662 = vlaneseq
        %v663 = vshrl.u32 %v662, 7
        %v664 = vsub.s32 1, %v663
        %v665 = vrot.slane %v589, %v664
        %v682 = vunpack.c.l.b16 %v490
        %v683 = vunpack.c.h.b16 %v490
        %v684 = vunpack.c.l.b16 %v491
        %v685 = vunpack.c.h.b16 %v491
        %v686 = vunpack.c.l.b16 %v492
        %v687 = vunpack.c.h.b16 %v492
        %v688 = vunpack.c.l.b16 %v493
        %v689 = vunpack.c.h.b16 %v493
        %v690 = vunpack.c.l.b16 %v494
        %v691 = vunpack.c.h.b16 %v494
        %v692 = vunpack.c.l.b16 %v495
        %v693 = vunpack.c.h.b16 %v495
        %v694 = vunpack.c.l.b16 %v496
        %v695 = vunpack.c.h.b16 %v496
        %v696 = vunpack.c.l.b16 %v497
        %v697 = vunpack.c.h.b16 %v497
        %v698 = vunpack.c.l.b16 %v498
        %v699 = vunpack.c.h.b16 %v498
        %v700 = vunpack.c.l.b16 %v499
        %v701 = vunpack.c.h.b16 %v499
        %v702 = vunpack.c.l.b16 %v500
        %v703 = vunpack.c.h.b16 %v500
        %v704 = vunpack.c.l.b16 %v501
        %v705 = vunpack.c.h.b16 %v501
        %v706 = vunpack.c.l.b16 %v502
        %v707 = vunpack.c.h.b16 %v502
        %v708 = vunpack.c.l.b16 %v503
        %v709 = vunpack.c.h.b16 %v503
        %v710 = vunpack.c.l.b16 %v504
        %v711 = vunpack.c.h.b16 %v504
        %v712 = vunpack.c.l.b16 %v505
        %v713 = vunpack.c.h.b16 %v505
        %v714 = vpack.c.b16 %v690, %v682
        %v715 = vpack.c.b16 %v691, %v683
        %v716 = vpack.c.b16 %v692, %v684
        %v717 = vpack.c.b16 %v693, %v685
        %v718 = vpack.c.b16 %v694, %v686
        %v719 = vpack.c.b16 %v695, %v687
        %v720 = vpack.c.b16 %v696, %v688
        %v721 = vpack.c.b16 %v697, %v689
        %v722 = vpack.c.b16 %v706, %v698
        %v723 = vpack.c.b16 %v707, %v699
        %v724 = vpack.c.b16 %v708, %v700
        %v725 = vpack.c.b16 %v709, %v701
        %v726 = vpack.c.b16 %v710, %v702
        %v727 = vpack.c.b16 %v711, %v703
        %v728 = vpack.c.b16 %v712, %v704
        %v729 = vpack.c.b16 %v713, %v705
        %v747 = vsel %vm594, %v632, 0
        %v750 = vsel %vm594, %v633, 0
        %752 = vmatprep.subr.bf16.mxu0 %v715
        %753 = vmatpush1.bf16.msra.mxu0 %v714
        %754 = vmatprep.subr.bf16.mxu0 %v723
        %755 = vmatpush1.bf16.msra.mxu0 %v722
        %756 = vmatprep.subr.bf16.mxu0 0
        %757 = vmatpush1.bf16.msra.mxu0 0
        %758 = vmatprep.subr.bf16.mxu0 0
        %759 = vmatpush1.bf16.msra.mxu0 0
        %760 = vmatprep.subr.bf16.mxu0 0
        %761 = vmatpush1.bf16.msra.mxu0 0
        %762 = vmatprep.subr.bf16.mxu0 0
        %763 = vmatpush1.bf16.msra.mxu0 0
        %764 = vmatprep.subr.bf16.mxu0 0
        %765 = vmatpush1.bf16.msra.mxu0 0
        %766 = vmatprep.subr.bf16.mxu0 0
        %767 = vmatpush1.bf16.msra.mxu0 0
        %768 = vmatprep.subr.bf16.mxu0 0
        %769 = vmatpush1.bf16.msra.mxu0 0
        %770 = vmatprep.subr.bf16.mxu0 0
        %771 = vmatpush1.bf16.msra.mxu0 0
        %772 = vmatprep.subr.bf16.mxu0 0
        %773 = vmatpush1.bf16.msra.mxu0 0
        %774 = vmatprep.subr.bf16.mxu0 0
        %775 = vmatpush1.bf16.msra.mxu0 0
        %776 = vmatprep.subr.bf16.mxu0 0
        %777 = vmatpush1.bf16.msra.mxu0 0
        %778 = vmatprep.subr.bf16.mxu0 0
        %779 = vmatpush1.bf16.msra.mxu0 0
        %780 = vmatprep.subr.bf16.mxu0 0
        %781 = vmatpush1.bf16.msra.mxu0 0
        %782 = vmatprep.subr.bf16.mxu0 0
        %783 = vmatpush1.bf16.msra.mxu0 0
        %784 = vmatprep.mubr.bf16.mxu0 0
        %785 = vmatmul.mubr.bf16.gmra.mrb[0].mxu0 %v747
        %v786 = vpop.f32.mrb[0].mxu0
        %v787 = vadd.f32 %v637, %v786
        %v788 = vpop.f32.mrb[0].mxu0
        %v789 = vadd.f32 %v641, %v788
        %v790 = vpop.f32.mrb[0].mxu0
        %v791 = vadd.f32 %v637, %v790
        %v792 = vpop.f32.mrb[0].mxu0
        %v793 = vadd.f32 %v641, %v792
        %794 = vmatprep.mubr.bf16.mxu0 0
        %795 = vmatmul.mubr.bf16.gmra.mrb[0].mxu0 %v750
        %v796 = vpop.f32.mrb[0].mxu0
        %v797 = vadd.f32 %v637, %v796
        %v798 = vpop.f32.mrb[0].mxu0
        %v799 = vadd.f32 %v641, %v798
        %v800 = vpop.f32.mrb[0].mxu0
        %v801 = vadd.f32 %v637, %v800
        %v802 = vpop.f32.mrb[0].mxu0
        %v803 = vadd.f32 %v641, %v802
        %804 = vdwg.mxu0
        %805 = vmatprep.subr.bf16.mxu0 %v717
        %806 = vmatpush1.bf16.msra.mxu0 %v716
        %807 = vmatprep.subr.bf16.mxu0 %v725
        %808 = vmatpush1.bf16.msra.mxu0 %v724
        %809 = vmatprep.subr.bf16.mxu0 0
        %810 = vmatpush1.bf16.msra.mxu0 0
        %811 = vmatprep.subr.bf16.mxu0 0
        %812 = vmatpush1.bf16.msra.mxu0 0
        %813 = vmatprep.subr.bf16.mxu0 0
        %814 = vmatpush1.bf16.msra.mxu0 0
        %815 = vmatprep.subr.bf16.mxu0 0
        %816 = vmatpush1.bf16.msra.mxu0 0
        %817 = vmatprep.subr.bf16.mxu0 0
        %818 = vmatpush1.bf16.msra.mxu0 0
        %819 = vmatprep.subr.bf16.mxu0 0
        %820 = vmatpush1.bf16.msra.mxu0 0
        %821 = vmatprep.subr.bf16.mxu0 0
        %822 = vmatpush1.bf16.msra.mxu0 0
        %823 = vmatprep.subr.bf16.mxu0 0
        %824 = vmatpush1.bf16.msra.mxu0 0
        %825 = vmatprep.subr.bf16.mxu0 0
        %826 = vmatpush1.bf16.msra.mxu0 0
        %827 = vmatprep.subr.bf16.mxu0 0
        %828 = vmatpush1.bf16.msra.mxu0 0
        %829 = vmatprep.subr.bf16.mxu0 0
        %830 = vmatpush1.bf16.msra.mxu0 0
        %831 = vmatprep.subr.bf16.mxu0 0
        %832 = vmatpush1.bf16.msra.mxu0 0
        %833 = vmatprep.subr.bf16.mxu0 0
        %834 = vmatpush1.bf16.msra.mxu0 0
        %835 = vmatprep.subr.bf16.mxu0 0
        %836 = vmatpush1.bf16.msra.mxu0 0
        %837 = vmatprep.mubr.bf16.mxu0 0
        %838 = vmatmul.mubr.bf16.gmra.mrb[0].mxu0 %v747
        %v839 = vpop.f32.mrb[0].mxu0
        %v840 = vadd.f32 %v645, %v839
        %v841 = vpop.f32.mrb[0].mxu0
        %v842 = vadd.f32 %v649, %v841
        %v843 = vpop.f32.mrb[0].mxu0
        %v844 = vadd.f32 %v645, %v843
        %v845 = vpop.f32.mrb[0].mxu0
        %v846 = vadd.f32 %v649, %v845
        %847 = vmatprep.mubr.bf16.mxu0 0
        %848 = vmatmul.mubr.bf16.gmra.mrb[0].mxu0 %v750
        %v849 = vpop.f32.mrb[0].mxu0
        %v850 = vadd.f32 %v645, %v849
        %v851 = vpop.f32.mrb[0].mxu0
        %v852 = vadd.f32 %v649, %v851
        %v853 = vpop.f32.mrb[0].mxu0
        %v854 = vadd.f32 %v645, %v853
        %v855 = vpop.f32.mrb[0].mxu0
        %v856 = vadd.f32 %v649, %v855
        %857 = vdwg.mxu0
        %858 = vmatprep.subr.bf16.mxu0 %v719
        %859 = vmatpush1.bf16.msra.mxu0 %v718
        %860 = vmatprep.subr.bf16.mxu0 %v727
        %861 = vmatpush1.bf16.msra.mxu0 %v726
        %862 = vmatprep.subr.bf16.mxu0 0
        %863 = vmatpush1.bf16.msra.mxu0 0
        %864 = vmatprep.subr.bf16.mxu0 0
        %865 = vmatpush1.bf16.msra.mxu0 0
        %866 = vmatprep.subr.bf16.mxu0 0
        %867 = vmatpush1.bf16.msra.mxu0 0
        %868 = vmatprep.subr.bf16.mxu0 0
        %869 = vmatpush1.bf16.msra.mxu0 0
        %870 = vmatprep.subr.bf16.mxu0 0
        %871 = vmatpush1.bf16.msra.mxu0 0
        %872 = vmatprep.subr.bf16.mxu0 0
        %873 = vmatpush1.bf16.msra.mxu0 0
        %874 = vmatprep.subr.bf16.mxu0 0
        %875 = vmatpush1.bf16.msra.mxu0 0
        %876 = vmatprep.subr.bf16.mxu0 0
        %877 = vmatpush1.bf16.msra.mxu0 0
        %878 = vmatprep.subr.bf16.mxu0 0
        %879 = vmatpush1.bf16.msra.mxu0 0
        %880 = vmatprep.subr.bf16.mxu0 0
        %881 = vmatpush1.bf16.msra.mxu0 0
        %882 = vmatprep.subr.bf16.mxu0 0
        %883 = vmatpush1.bf16.msra.mxu0 0
        %884 = vmatprep.subr.bf16.mxu0 0
        %885 = vmatpush1.bf16.msra.mxu0 0
        %886 = vmatprep.subr.bf16.mxu0 0
        %887 = vmatpush1.bf16.msra.mxu0 0
        %888 = vmatprep.subr.bf16.mxu0 0
        %889 = vmatpush1.bf16.msra.mxu0 0
        %890 = vmatprep.mubr.bf16.mxu0 0
        %891 = vmatmul.mubr.bf16.gmra.mrb[0].mxu0 %v747
        %v892 = vpop.f32.mrb[0].mxu0
        %v893 = vadd.f32 %v653, %v892
        %v894 = vpop.f32.mrb[0].mxu0
        %v895 = vadd.f32 %v657, %v894
        %v896 = vpop.f32.mrb[0].mxu0
        %v897 = vadd.f32 %v653, %v896
        %v898 = vpop.f32.mrb[0].mxu0
        %v899 = vadd.f32 %v657, %v898
        %900 = vmatprep.mubr.bf16.mxu0 0
        %901 = vmatmul.mubr.bf16.gmra.mrb[0].mxu0 %v750
        %v902 = vpop.f32.mrb[0].mxu0
        %v903 = vadd.f32 %v653, %v902
        %v904 = vpop.f32.mrb[0].mxu0
        %v905 = vadd.f32 %v657, %v904
        %v906 = vpop.f32.mrb[0].mxu0
        %v907 = vadd.f32 %v653, %v906
        %v908 = vpop.f32.mrb[0].mxu0
        %v909 = vadd.f32 %v657, %v908
        %910 = vdwg.mxu0
        %911 = vmatprep.subr.bf16.mxu0 %v721
        %912 = vmatpush1.bf16.msra.mxu0 %v720
        %913 = vmatprep.subr.bf16.mxu0 %v729
        %914 = vmatpush1.bf16.msra.mxu0 %v728
        %915 = vmatprep.subr.bf16.mxu0 0
        %916 = vmatpush1.bf16.msra.mxu0 0
        %917 = vmatprep.subr.bf16.mxu0 0
        %918 = vmatpush1.bf16.msra.mxu0 0
        %919 = vmatprep.subr.bf16.mxu0 0
        %920 = vmatpush1.bf16.msra.mxu0 0
        %921 = vmatprep.subr.bf16.mxu0 0
        %922 = vmatpush1.bf16.msra.mxu0 0
        %923 = vmatprep.subr.bf16.mxu0 0
        %924 = vmatpush1.bf16.msra.mxu0 0
        %925 = vmatprep.subr.bf16.mxu0 0
        %926 = vmatpush1.bf16.msra.mxu0 0
        %927 = vmatprep.subr.bf16.mxu0 0
        %928 = vmatpush1.bf16.msra.mxu0 0
        %929 = vmatprep.subr.bf16.mxu0 0
        %930 = vmatpush1.bf16.msra.mxu0 0
        %931 = vmatprep.subr.bf16.mxu0 0
        %932 = vmatpush1.bf16.msra.mxu0 0
        %933 = vmatprep.subr.bf16.mxu0 0
        %934 = vmatpush1.bf16.msra.mxu0 0
        %935 = vmatprep.subr.bf16.mxu0 0
        %936 = vmatpush1.bf16.msra.mxu0 0
        %937 = vmatprep.subr.bf16.mxu0 0
        %938 = vmatpush1.bf16.msra.mxu0 0
        %939 = vmatprep.subr.bf16.mxu0 0
        %940 = vmatpush1.bf16.msra.mxu0 0
        %941 = vmatprep.subr.bf16.mxu0 0
        %942 = vmatpush1.bf16.msra.mxu0 0
        %943 = vmatprep.mubr.bf16.mxu0 0
        %944 = vmatmul.mubr.bf16.gmra.mrb[0].mxu0 %v747
        %v945 = vpop.f32.mrb[0].mxu0
        %v946 = vadd.f32 %v661, %v945
        %v947 = vpop.f32.mrb[0].mxu0
        %v948 = vadd.f32 %v665, %v947
        %v949 = vpop.f32.mrb[0].mxu0
        %v950 = vadd.f32 %v661, %v949
        %v951 = vpop.f32.mrb[0].mxu0
        %v952 = vadd.f32 %v665, %v951
        %953 = vmatprep.mubr.bf16.mxu0 0
        %954 = vmatmul.mubr.bf16.gmra.mrb[0].mxu0 %v750
        %v955 = vpop.f32.mrb[0].mxu0
        %v956 = vadd.f32 %v661, %v955
        %v957 = vpop.f32.mrb[0].mxu0
        %v958 = vadd.f32 %v665, %v957
        %v959 = vpop.f32.mrb[0].mxu0
        %v960 = vadd.f32 %v661, %v959
        %v961 = vpop.f32.mrb[0].mxu0
        %v962 = vadd.f32 %v665, %v961
        %963 = vdwg.mxu0
        %v964 = vld [vmem:[%s437] sm:$0xf]
        %v965 = vld [vmem:[%s437 + $0x4] sm:$0xf]
        %v966 = vld [vmem:[%s437 + $0x8] sm:$0xf]
        %v967 = vld [vmem:[%s437 + $0xc] sm:$0xf]
        %v968 = vunpack.c.l.bf16 %v964
        %v969 = vunpack.c.l.bf16 %v965
        %v970 = vunpack.c.l.bf16 %v966
        %v971 = vunpack.c.l.bf16 %v967
        %v976 = vcombine.low %v787, %v789
        %v977 = vcombine.high %v787, %v789
        %v978 = vcombine.low %v791, %v793
        %v979 = vcombine.high %v791, %v793
        %v985 = vunpack.c.l.s4 1935823168
        %v986 = vunpack.c.0.s8 %v985
        %v987 = vlaneseq
        %v988 = vshrl.u32 %v987, 7
        %v989 = vsub.s32 %v986, %v988
        %v990 = vrot.slane %v976, %v989
        %v992 = vunpack.c.l.s4 1935823168
        %v993 = vunpack.c.0.s8 %v992
        %v994 = vlaneseq
        %v995 = vshrl.u32 %v994, 7
        %v996 = vsub.s32 %v993, %v995
        %v997 = vrot.slane %v977, %v996
        %v999 = vunpack.c.l.s4 1935823168
        %v1000 = vunpack.c.0.s8 %v999
        %v1001 = vlaneseq
        %v1002 = vshrl.u32 %v1001, 7
        %v1003 = vsub.s32 %v1000, %v1002
        %v1004 = vrot.slane %v978, %v1003
        %v1006 = vunpack.c.l.s4 1935823168
        %v1007 = vunpack.c.0.s8 %v1006
        %v1008 = vlaneseq
        %v1009 = vshrl.u32 %v1008, 7
        %v1010 = vsub.s32 %v1007, %v1009
        %v1011 = vrot.slane %v979, %v1010
        %v1012 = vpack.c.bf16 %v997, %v990
        %v1013 = vpack.c.bf16 %v1011, %v1004
        %v1014 = vpack.c.bf16 %v897, %v893
        %v1015 = vpack.c.bf16 %v950, %v946
        %1016 = vmatprep.subr.bf16.mxu0 0
        %1017 = vmatpush1.bf16.xpose.msra.mxu0 %v1014
        %1018 = vmatprep.subr.bf16.mxu0 0
        %1019 = vmatpush1.bf16.xpose.msra.mxu0 0
        %1020 = vmatprep.subr.bf16.mxu0 0
        %1021 = vmatpush1.bf16.xpose.msra.mxu0 0
        %1022 = vmatprep.subr.bf16.mxu0 0
        %1023 = vmatpush1.bf16.xpose.msra.mxu0 0
        %1024 = vmatprep.subr.bf16.mxu0 0
        %1025 = vmatpush1.bf16.xpose.msra.mxu0 0
        %1026 = vmatprep.subr.bf16.mxu0 0
        %1027 = vmatpush1.bf16.xpose.msra.mxu0 0
        %1028 = vmatprep.subr.bf16.mxu0 0
        %1029 = vmatpush1.bf16.xpose.msra.mxu0 0
        %1030 = vmatprep.subr.bf16.mxu0 0
        %1031 = vmatpush1.bf16.xpose.msra.mxu0 0
        %1032 = vmatprep.subr.bf16.mxu0 0
        %1033 = vmatpush1.bf16.xpose.msra.mxu0 0
        %1034 = vmatprep.subr.bf16.mxu0 0
        %1035 = vmatpush1.bf16.xpose.msra.mxu0 0
        %1036 = vmatprep.subr.bf16.mxu0 0
        %1037 = vmatpush1.bf16.xpose.msra.mxu0 0
        %1038 = vmatprep.subr.bf16.mxu0 0
        %1039 = vmatpush1.bf16.xpose.msra.mxu0 0
        %1040 = vmatprep.subr.bf16.mxu0 0
        %1041 = vmatpush1.bf16.xpose.msra.mxu0 0
        %1042 = vmatprep.subr.bf16.mxu0 0
        %1043 = vmatpush1.bf16.xpose.msra.mxu0 0
        %1044 = vmatprep.subr.bf16.mxu0 0
        %1045 = vmatpush1.bf16.xpose.msra.mxu0 0
        %1046 = vmatprep.subr.bf16.mxu0 0
        %1047 = vmatpush1.bf16.xpose.msra.mxu0 0
        %1048 = vmatprep.mubr.bf16.mxu0 0
        %1049 = vmatmul.mubr.bf16.gmra.mrb[0].mxu0 %v1012
        %v1050 = vpop.f32.mrb[0].mxu0
        %v1051 = vadd.f32 %v968, %v1050
        %v1052 = vpop.f32.mrb[0].mxu0
        %v1053 = vpop.f32.mrb[0].mxu0
        %v1054 = vadd.f32 %v969, %v1053
        %v1055 = vpop.f32.mrb[0].mxu0
        %1056 = vmatprep.mubr.bf16.mxu0 0
        %1057 = vmatmul.mubr.bf16.gmra.mrb[0].mxu0 %v1013
        %v1058 = vpop.f32.mrb[0].mxu0
        %v1059 = vadd.f32 %v970, %v1058
        %v1060 = vpop.f32.mrb[0].mxu0
        %v1061 = vpop.f32.mrb[0].mxu0
        %v1062 = vadd.f32 %v971, %v1061
        %v1063 = vpop.f32.mrb[0].mxu0
        %1064 = vdwg.mxu0
        %vm1065 = vcmask 130048
        %v1066 = vsel %vm1065, %v1051, -inf
        %1067 = vmax.xlane.f32.xlu0 %v1066
        %v1068 = vpop.xlane.xlu0 %1067
        %v1069 = vsel %vm1065, %v1054, -inf
        %1070 = vmax.xlane.f32.xlu0 %v1069
        %v1071 = vpop.xlane.xlu0 %1070
        %v1072 = vsel %vm1065, %v1059, -inf
        %1073 = vmax.xlane.f32.xlu0 %v1072
        %v1074 = vpop.xlane.xlu0 %1073
        %v1075 = vsel %vm1065, %v1062, -inf
        %1076 = vmax.xlane.f32.xlu0 %v1075
        %v1077 = vpop.xlane.xlu0 %1076
        %v1078 = vsub.f32 %v1051, %v1068
        %v1079 = vsub.f32 %v1054, %v1071
        %v1080 = vsub.f32 %v1059, %v1074
        %v1081 = vsub.f32 %v1062, %v1077
        %v1082 = vmul.f32 %v1078, 1.442695
        %v1083 = vpow.pop %v1082
        %v1084 = vmul.f32 %v1079, 1.442695
        %v1085 = vpow.pop %v1084
        %v1086 = vmul.f32 %v1080, 1.442695
        %v1087 = vpow.pop %v1086
        %v1088 = vmul.f32 %v1081, 1.442695
        %v1089 = vpow.pop %v1088
        %v1090 = vsel %vm1065, %v1083, 0.0
        %1091 = vadd.xlane.f32.xlu0 %v1090
        %v1092 = vpop.xlane.xlu0 %1091
        %v1093 = vsel %vm1065, %v1085, 0.0
        %1094 = vadd.xlane.f32.xlu0 %v1093
        %v1095 = vpop.xlane.xlu0 %1094
        %v1096 = vsel %vm1065, %v1087, 0.0
        %1097 = vadd.xlane.f32.xlu0 %v1096
        %v1098 = vpop.xlane.xlu0 %1097
        %v1099 = vsel %vm1065, %v1089, 0.0
        %1100 = vadd.xlane.f32.xlu0 %v1099
        %v1101 = vpop.xlane.xlu0 %1100
        %v1102 = vrcp.pop %v1092
        %v1103 = vrcp.pop %v1095
        %v1104 = vrcp.pop %v1098
        %v1105 = vrcp.pop %v1101
        %v1106 = vmul.f32 %v1083, %v1102
        %v1107 = vmul.f32 %v1085, %v1103
        %v1108 = vmul.f32 %v1087, %v1104
        %v1109 = vmul.f32 %v1089, %v1105
        %v1110 = vpack.c.bf16 %v1107, %v1106
        %v1111 = vpack.c.bf16 %v1109, %v1108
        %v1113 = vsel %vm1065, %v1110, 0
        %v1116 = vsel %vm1065, %v1111, 0
        %1118 = vmatprep.subr.bf16.mxu0 0
        %1119 = vmatpush1.bf16.msra.mxu0 %v1015
        %1120 = vmatprep.subr.bf16.mxu0 0
        %1121 = vmatpush1.bf16.msra.mxu0 0
        %1122 = vmatprep.subr.bf16.mxu0 0
        %1123 = vmatpush1.bf16.msra.mxu0 0
        %1124 = vmatprep.subr.bf16.mxu0 0
        %1125 = vmatpush1.bf16.msra.mxu0 0
        %1126 = vmatprep.subr.bf16.mxu0 0
        %1127 = vmatpush1.bf16.msra.mxu0 0
        %1128 = vmatprep.subr.bf16.mxu0 0
        %1129 = vmatpush1.bf16.msra.mxu0 0
        %1130 = vmatprep.subr.bf16.mxu0 0
        %1131 = vmatpush1.bf16.msra.mxu0 0
        %1132 = vmatprep.subr.bf16.mxu0 0
        %1133 = vmatpush1.bf16.msra.mxu0 0
        %1134 = vmatprep.subr.bf16.mxu0 0
        %1135 = vmatpush1.bf16.msra.mxu0 0
        %1136 = vmatprep.subr.bf16.mxu0 0
        %1137 = vmatpush1.bf16.msra.mxu0 0
        %1138 = vmatprep.subr.bf16.mxu0 0
        %1139 = vmatpush1.bf16.msra.mxu0 0
        %1140 = vmatprep.subr.bf16.mxu0 0
        %1141 = vmatpush1.bf16.msra.mxu0 0
        %1142 = vmatprep.subr.bf16.mxu0 0
        %1143 = vmatpush1.bf16.msra.mxu0 0
        %1144 = vmatprep.subr.bf16.mxu0 0
        %1145 = vmatpush1.bf16.msra.mxu0 0
        %1146 = vmatprep.subr.bf16.mxu0 0
        %1147 = vmatpush1.bf16.msra.mxu0 0
        %1148 = vmatprep.subr.bf16.mxu0 0
        %1149 = vmatpush1.bf16.msra.mxu0 0
        %1150 = vmatprep.mubr.bf16.mxu0 0
        %1151 = vmatmul.mubr.bf16.gmra.mrb[0].mxu0 %v1113
        %v1152 = vpop.f32.mrb[0].mxu0
        %v1153 = vadd.f32 0.0, %v1152
        %v1154 = vpop.f32.mrb[0].mxu0
        %v1155 = vpop.f32.mrb[0].mxu0
        %v1156 = vadd.f32 0.0, %v1155
        %v1157 = vpop.f32.mrb[0].mxu0
        %1158 = vmatprep.mubr.bf16.mxu0 0
        %1159 = vmatmul.mubr.bf16.gmra.mrb[0].mxu0 %v1116
        %v1160 = vpop.f32.mrb[0].mxu0
        %v1161 = vadd.f32 0.0, %v1160
        %v1162 = vpop.f32.mrb[0].mxu0
        %v1163 = vpop.f32.mrb[0].mxu0
        %v1164 = vadd.f32 0.0, %v1163
        %v1165 = vpop.f32.mrb[0].mxu0
        %1166 = vdwg.mxu0
        %v1168 = vunpack.c.l.s4 1966171168
        %v1169 = vunpack.c.0.s8 %v1168
        %v1170 = vlaneseq
        %v1171 = vshrl.u32 %v1170, 7
        %v1172 = vsub.s32 %v1169, %v1171
        %v1173 = vrot.slane %v1153, %v1172
        %v1175 = vunpack.c.l.s4 1966171168
        %v1176 = vunpack.c.0.s8 %v1175
        %v1177 = vlaneseq
        %v1178 = vshrl.u32 %v1177, 7
        %v1179 = vsub.s32 %v1176, %v1178
        %v1180 = vrot.slane %v1156, %v1179
        %v1182 = vunpack.c.l.s4 1966171168
        %v1183 = vunpack.c.0.s8 %v1182
        %v1184 = vlaneseq
        %v1185 = vshrl.u32 %v1184, 7
        %v1186 = vsub.s32 %v1183, %v1185
        %v1187 = vrot.slane %v1161, %v1186
        %v1189 = vunpack.c.l.s4 1966171168
        %v1190 = vunpack.c.0.s8 %v1189
        %v1191 = vlaneseq
        %v1192 = vshrl.u32 %v1191, 7
        %v1193 = vsub.s32 %v1190, %v1192
        %v1194 = vrot.slane %v1164, %v1193
        %v1199 = vcombine.low %v1173, %v1180
        %v1200 = vcombine.high %v1173, %v1180
        %v1201 = vcombine.low %v1187, %v1194
        %v1202 = vcombine.high %v1187, %v1194
        %v1207 = vpack.c.bf16 %v1201, %v1199
        %v1208 = vpack.c.bf16 %v1202, %v1200
        %v1213 = vcombine.low %v840, %v842
        %v1214 = vcombine.high %v840, %v842
        %v1215 = vcombine.low %v844, %v846
        %v1216 = vcombine.high %v844, %v846
        %v1222 = vunpack.c.l.s4 1935823168
        %v1223 = vunpack.c.0.s8 %v1222
        %v1224 = vlaneseq
        %v1225 = vshrl.u32 %v1224, 7
        %v1226 = vsub.s32 %v1223, %v1225
        %v1227 = vrot.slane %v1213, %v1226
        %v1229 = vunpack.c.l.s4 1935823168
        %v1230 = vunpack.c.0.s8 %v1229
        %v1231 = vlaneseq
        %v1232 = vshrl.u32 %v1231, 7
        %v1233 = vsub.s32 %v1230, %v1232
        %v1234 = vrot.slane %v1214, %v1233
        %v1236 = vunpack.c.l.s4 1935823168
        %v1237 = vunpack.c.0.s8 %v1236
        %v1238 = vlaneseq
        %v1239 = vshrl.u32 %v1238, 7
        %v1240 = vsub.s32 %v1237, %v1239
        %v1241 = vrot.slane %v1215, %v1240
        %v1243 = vunpack.c.l.s4 1935823168
        %v1244 = vunpack.c.0.s8 %v1243
        %v1245 = vlaneseq
        %v1246 = vshrl.u32 %v1245, 7
        %v1247 = vsub.s32 %v1244, %v1246
        %v1248 = vrot.slane %v1216, %v1247
        %v1249 = vpack.c.bf16 %v1234, %v1227
        %v1250 = vpack.c.bf16 %v1248, %v1241
        %v1251 = vpack.c.bf16 %v899, %v895
        %v1252 = vpack.c.bf16 %v952, %v948
        %1253 = vmatprep.subr.bf16.mxu0 0
        %1254 = vmatpush1.bf16.xpose.msra.mxu0 %v1251
        %1255 = vmatprep.subr.bf16.mxu0 0
        %1256 = vmatpush1.bf16.xpose.msra.mxu0 0
        %1257 = vmatprep.subr.bf16.mxu0 0
        %1258 = vmatpush1.bf16.xpose.msra.mxu0 0
        %1259 = vmatprep.subr.bf16.mxu0 0
        %1260 = vmatpush1.bf16.xpose.msra.mxu0 0
        %1261 = vmatprep.subr.bf16.mxu0 0
        %1262 = vmatpush1.bf16.xpose.msra.mxu0 0
        %1263 = vmatprep.subr.bf16.mxu0 0
        %1264 = vmatpush1.bf16.xpose.msra.mxu0 0
        %1265 = vmatprep.subr.bf16.mxu0 0
        %1266 = vmatpush1.bf16.xpose.msra.mxu0 0
        %1267 = vmatprep.subr.bf16.mxu0 0
        %1268 = vmatpush1.bf16.xpose.msra.mxu0 0
        %1269 = vmatprep.subr.bf16.mxu0 0
        %1270 = vmatpush1.bf16.xpose.msra.mxu0 0
        %1271 = vmatprep.subr.bf16.mxu0 0
        %1272 = vmatpush1.bf16.xpose.msra.mxu0 0
        %1273 = vmatprep.subr.bf16.mxu0 0
        %1274 = vmatpush1.bf16.xpose.msra.mxu0 0
        %1275 = vmatprep.subr.bf16.mxu0 0
        %1276 = vmatpush1.bf16.xpose.msra.mxu0 0
        %1277 = vmatprep.subr.bf16.mxu0 0
        %1278 = vmatpush1.bf16.xpose.msra.mxu0 0
        %1279 = vmatprep.subr.bf16.mxu0 0
        %1280 = vmatpush1.bf16.xpose.msra.mxu0 0
        %1281 = vmatprep.subr.bf16.mxu0 0
        %1282 = vmatpush1.bf16.xpose.msra.mxu0 0
        %1283 = vmatprep.subr.bf16.mxu0 0
        %1284 = vmatpush1.bf16.xpose.msra.mxu0 0
        %1285 = vmatprep.mubr.bf16.mxu0 0
        %1286 = vmatmul.mubr.bf16.gmra.mrb[0].mxu0 %v1249
        %v1287 = vpop.f32.mrb[0].mxu0
        %v1288 = vadd.f32 %v968, %v1287
        %v1289 = vpop.f32.mrb[0].mxu0
        %v1290 = vpop.f32.mrb[0].mxu0
        %v1291 = vadd.f32 %v969, %v1290
        %v1292 = vpop.f32.mrb[0].mxu0
        %1293 = vmatprep.mubr.bf16.mxu0 0
        %1294 = vmatmul.mubr.bf16.gmra.mrb[0].mxu0 %v1250
        %v1295 = vpop.f32.mrb[0].mxu0
        %v1296 = vadd.f32 %v970, %v1295
        %v1297 = vpop.f32.mrb[0].mxu0
        %v1298 = vpop.f32.mrb[0].mxu0
        %v1299 = vadd.f32 %v971, %v1298
        %v1300 = vpop.f32.mrb[0].mxu0
        %1301 = vdwg.mxu0
        %v1302 = vsel %vm1065, %v1288, -inf
        %1303 = vmax.xlane.f32.xlu0 %v1302
        %v1304 = vpop.xlane.xlu0 %1303
        %v1305 = vsel %vm1065, %v1291, -inf
        %1306 = vmax.xlane.f32.xlu0 %v1305
        %v1307 = vpop.xlane.xlu0 %1306
        %v1308 = vsel %vm1065, %v1296, -inf
        %1309 = vmax.xlane.f32.xlu0 %v1308
        %v1310 = vpop.xlane.xlu0 %1309
        %v1311 = vsel %vm1065, %v1299, -inf
        %1312 = vmax.xlane.f32.xlu0 %v1311
        %v1313 = vpop.xlane.xlu0 %1312
        %v1314 = vsub.f32 %v1288, %v1304
        %v1315 = vsub.f32 %v1291, %v1307
        %v1316 = vsub.f32 %v1296, %v1310
        %v1317 = vsub.f32 %v1299, %v1313
        %v1318 = vmul.f32 %v1314, 1.442695
        %v1319 = vpow.pop %v1318
        %v1320 = vmul.f32 %v1315, 1.442695
        %v1321 = vpow.pop %v1320
        %v1322 = vmul.f32 %v1316, 1.442695
        %v1323 = vpow.pop %v1322
        %v1324 = vmul.f32 %v1317, 1.442695
        %v1325 = vpow.pop %v1324
        %v1326 = vsel %vm1065, %v1319, 0.0
        %1327 = vadd.xlane.f32.xlu0 %v1326
        %v1328 = vpop.xlane.xlu0 %1327
        %v1329 = vsel %vm1065, %v1321, 0.0
        %1330 = vadd.xlane.f32.xlu0 %v1329
        %v1331 = vpop.xlane.xlu0 %1330
        %v1332 = vsel %vm1065, %v1323, 0.0
        %1333 = vadd.xlane.f32.xlu0 %v1332
        %v1334 = vpop.xlane.xlu0 %1333
        %v1335 = vsel %vm1065, %v1325, 0.0
        %1336 = vadd.xlane.f32.xlu0 %v1335
        %v1337 = vpop.xlane.xlu0 %1336
        %v1338 = vrcp.pop %v1328
        %v1339 = vrcp.pop %v1331
        %v1340 = vrcp.pop %v1334
        %v1341 = vrcp.pop %v1337
        %v1342 = vmul.f32 %v1319, %v1338
        %v1343 = vmul.f32 %v1321, %v1339
        %v1344 = vmul.f32 %v1323, %v1340
        %v1345 = vmul.f32 %v1325, %v1341
        %v1346 = vpack.c.bf16 %v1343, %v1342
        %v1347 = vpack.c.bf16 %v1345, %v1344
        %v1349 = vsel %vm1065, %v1346, 0
        %v1352 = vsel %vm1065, %v1347, 0
        %1354 = vmatprep.subr.bf16.mxu0 0
        %1355 = vmatpush1.bf16.msra.mxu0 %v1252
        %1356 = vmatprep.subr.bf16.mxu0 0
        %1357 = vmatpush1.bf16.msra.mxu0 0
        %1358 = vmatprep.subr.bf16.mxu0 0
        %1359 = vmatpush1.bf16.msra.mxu0 0
        %1360 = vmatprep.subr.bf16.mxu0 0
        %1361 = vmatpush1.bf16.msra.mxu0 0
        %1362 = vmatprep.subr.bf16.mxu0 0
        %1363 = vmatpush1.bf16.msra.mxu0 0
        %1364 = vmatprep.subr.bf16.mxu0 0
        %1365 = vmatpush1.bf16.msra.mxu0 0
        %1366 = vmatprep.subr.bf16.mxu0 0
        %1367 = vmatpush1.bf16.msra.mxu0 0
        %1368 = vmatprep.subr.bf16.mxu0 0
        %1369 = vmatpush1.bf16.msra.mxu0 0
        %1370 = vmatprep.subr.bf16.mxu0 0
        %1371 = vmatpush1.bf16.msra.mxu0 0
        %1372 = vmatprep.subr.bf16.mxu0 0
        %1373 = vmatpush1.bf16.msra.mxu0 0
        %1374 = vmatprep.subr.bf16.mxu0 0
        %1375 = vmatpush1.bf16.msra.mxu0 0
        %1376 = vmatprep.subr.bf16.mxu0 0
        %1377 = vmatpush1.bf16.msra.mxu0 0
        %1378 = vmatprep.subr.bf16.mxu0 0
        %1379 = vmatpush1.bf16.msra.mxu0 0
        %1380 = vmatprep.subr.bf16.mxu0 0
        %1381 = vmatpush1.bf16.msra.mxu0 0
        %1382 = vmatprep.subr.bf16.mxu0 0
        %1383 = vmatpush1.bf16.msra.mxu0 0
        %1384 = vmatprep.subr.bf16.mxu0 0
        %1385 = vmatpush1.bf16.msra.mxu0 0
        %1386 = vmatprep.mubr.bf16.mxu0 0
        %1387 = vmatmul.mubr.bf16.gmra.mrb[0].mxu0 %v1349
        %v1388 = vpop.f32.mrb[0].mxu0
        %v1389 = vadd.f32 0.0, %v1388
        %v1390 = vpop.f32.mrb[0].mxu0
        %v1391 = vpop.f32.mrb[0].mxu0
        %v1392 = vadd.f32 0.0, %v1391
        %v1393 = vpop.f32.mrb[0].mxu0
        %1394 = vmatprep.mubr.bf16.mxu0 0
        %1395 = vmatmul.mubr.bf16.gmra.mrb[0].mxu0 %v1352
        %v1396 = vpop.f32.mrb[0].mxu0
        %v1397 = vadd.f32 0.0, %v1396
        %v1398 = vpop.f32.mrb[0].mxu0
        %v1399 = vpop.f32.mrb[0].mxu0
        %v1400 = vadd.f32 0.0, %v1399
        %v1401 = vpop.f32.mrb[0].mxu0
        %1402 = vdwg.mxu0
        %v1404 = vunpack.c.l.s4 1966171168
        %v1405 = vunpack.c.0.s8 %v1404
        %v1406 = vlaneseq
        %v1407 = vshrl.u32 %v1406, 7
        %v1408 = vsub.s32 %v1405, %v1407
        %v1409 = vrot.slane %v1389, %v1408
        %v1411 = vunpack.c.l.s4 1966171168
        %v1412 = vunpack.c.0.s8 %v1411
        %v1413 = vlaneseq
        %v1414 = vshrl.u32 %v1413, 7
        %v1415 = vsub.s32 %v1412, %v1414
        %v1416 = vrot.slane %v1392, %v1415
        %v1418 = vunpack.c.l.s4 1966171168
        %v1419 = vunpack.c.0.s8 %v1418
        %v1420 = vlaneseq
        %v1421 = vshrl.u32 %v1420, 7
        %v1422 = vsub.s32 %v1419, %v1421
        %v1423 = vrot.slane %v1397, %v1422
        %v1425 = vunpack.c.l.s4 1966171168
        %v1426 = vunpack.c.0.s8 %v1425
        %v1427 = vlaneseq
        %v1428 = vshrl.u32 %v1427, 7
        %v1429 = vsub.s32 %v1426, %v1428
        %v1430 = vrot.slane %v1400, %v1429
        %v1435 = vcombine.low %v1409, %v1416
        %v1436 = vcombine.high %v1409, %v1416
        %v1437 = vcombine.low %v1423, %v1430
        %v1438 = vcombine.high %v1423, %v1430
        %v1443 = vpack.c.bf16 %v1437, %v1435
        %v1444 = vpack.c.bf16 %v1438, %v1436
        %v1477 = vunpack.c.l.b16 %v538
        %v1478 = vunpack.c.l.b16 %v539
        %v1479 = vunpack.c.l.b16 %v540
        %v1480 = vunpack.c.l.b16 %v541
        %v1481 = vunpack.c.l.b16 %v542
        %v1482 = vunpack.c.l.b16 %v543
        %v1483 = vunpack.c.l.b16 %v544
        %v1484 = vunpack.c.l.b16 %v545
        %v1485 = vunpack.c.l.b16 %v546
        %v1486 = vunpack.c.l.b16 %v547
        %v1487 = vunpack.c.l.b16 %v548
        %v1488 = vunpack.c.l.b16 %v549
        %v1489 = vunpack.c.l.b16 %v550
        %v1490 = vunpack.c.l.b16 %v551
        %v1491 = vunpack.c.l.b16 %v552
        %v1492 = vunpack.c.l.b16 %v553
        %v1493 = vunpack.c.l.b16 %v554
        %v1494 = vunpack.c.l.b16 %v555
        %v1495 = vunpack.c.l.b16 %v556
        %v1496 = vunpack.c.l.b16 %v557
        %v1497 = vunpack.c.l.b16 %v558
        %v1498 = vunpack.c.l.b16 %v559
        %v1499 = vunpack.c.l.b16 %v560
        %v1500 = vunpack.c.l.b16 %v561
        %v1501 = vunpack.c.l.b16 %v562
        %v1502 = vunpack.c.l.b16 %v563
        %v1503 = vunpack.c.l.b16 %v564
        %v1504 = vunpack.c.l.b16 %v565
        %v1505 = vunpack.c.l.b16 %v566
        %v1506 = vunpack.c.l.b16 %v567
        %v1507 = vunpack.c.l.b16 %v568
        %v1508 = vunpack.c.l.b16 %v569
        %v1509 = vpack.c.b16 %v1478, %v1477
        %v1510 = vpack.c.b16 %v1480, %v1479
        %v1511 = vpack.c.b16 %v1482, %v1481
        %v1512 = vpack.c.b16 %v1484, %v1483
        %v1513 = vpack.c.b16 %v1486, %v1485
        %v1514 = vpack.c.b16 %v1488, %v1487
        %v1515 = vpack.c.b16 %v1490, %v1489
        %v1516 = vpack.c.b16 %v1492, %v1491
        %v1517 = vpack.c.b16 %v1494, %v1493
        %v1518 = vpack.c.b16 %v1496, %v1495
        %v1519 = vpack.c.b16 %v1498, %v1497
        %v1520 = vpack.c.b16 %v1500, %v1499
        %v1521 = vpack.c.b16 %v1502, %v1501
        %v1522 = vpack.c.b16 %v1504, %v1503
        %v1523 = vpack.c.b16 %v1506, %v1505
        %v1524 = vpack.c.b16 %v1508, %v1507
        %1541 = vmatprep.subr.bf16.mxu0 0
        %1542 = vmatpush1.bf16.msra.mxu0 %v1509
        %1543 = vmatprep.subr.bf16.mxu0 0
        %1544 = vmatpush1.bf16.msra.mxu0 %v1510
        %1545 = vmatprep.subr.bf16.mxu0 0
        %1546 = vmatpush1.bf16.msra.mxu0 %v1511
        %1547 = vmatprep.subr.bf16.mxu0 0
        %1548 = vmatpush1.bf16.msra.mxu0 %v1512
        %1549 = vmatprep.subr.bf16.mxu0 0
        %1550 = vmatpush1.bf16.msra.mxu0 %v1513
        %1551 = vmatprep.subr.bf16.mxu0 0
        %1552 = vmatpush1.bf16.msra.mxu0 %v1514
        %1553 = vmatprep.subr.bf16.mxu0 0
        %1554 = vmatpush1.bf16.msra.mxu0 %v1515
        %1555 = vmatprep.subr.bf16.mxu0 0
        %1556 = vmatpush1.bf16.msra.mxu0 %v1516
        %1557 = vmatprep.subr.bf16.mxu0 0
        %1558 = vmatpush1.bf16.msra.mxu0 %v1517
        %1559 = vmatprep.subr.bf16.mxu0 0
        %1560 = vmatpush1.bf16.msra.mxu0 %v1518
        %1561 = vmatprep.subr.bf16.mxu0 0
        %1562 = vmatpush1.bf16.msra.mxu0 %v1519
        %1563 = vmatprep.subr.bf16.mxu0 0
        %1564 = vmatpush1.bf16.msra.mxu0 %v1520
        %1565 = vmatprep.subr.bf16.mxu0 0
        %1566 = vmatpush1.bf16.msra.mxu0 %v1521
        %1567 = vmatprep.subr.bf16.mxu0 0
        %1568 = vmatpush1.bf16.msra.mxu0 %v1522
        %1569 = vmatprep.subr.bf16.mxu0 0
        %1570 = vmatpush1.bf16.msra.mxu0 %v1523
        %1571 = vmatprep.subr.bf16.mxu0 0
        %1572 = vmatpush1.bf16.msra.mxu0 %v1524
        %1573 = vmatprep.mubr.bf16.mxu0 %v1444
        %1574 = vmatmul.mubr.bf16.gmra.mrb[0].mxu0 %v1443
        %v1575 = vpop.f32.mrb[0].mxu0
        %v1576 = vadd.f32 0.0, %v1575
        %v1577 = vpop.f32.mrb[0].mxu0
        %v1578 = vpop.f32.mrb[0].mxu0
        %v1579 = vadd.f32 0.0, %v1578
        %v1580 = vpop.f32.mrb[0].mxu0
        %1581 = vdwg.mxu0
        %v1614 = vunpack.c.l.b16 %v506
        %v1615 = vunpack.c.l.b16 %v507
        %v1616 = vunpack.c.l.b16 %v508
        %v1617 = vunpack.c.l.b16 %v509
        %v1618 = vunpack.c.l.b16 %v510
        %v1619 = vunpack.c.l.b16 %v511
        %v1620 = vunpack.c.l.b16 %v512
        %v1621 = vunpack.c.l.b16 %v513
        %v1622 = vunpack.c.l.b16 %v514
        %v1623 = vunpack.c.l.b16 %v515
        %v1624 = vunpack.c.l.b16 %v516
        %v1625 = vunpack.c.l.b16 %v517
        %v1626 = vunpack.c.l.b16 %v518
        %v1627 = vunpack.c.l.b16 %v519
        %v1628 = vunpack.c.l.b16 %v520
        %v1629 = vunpack.c.l.b16 %v521
        %v1630 = vunpack.c.l.b16 %v522
        %v1631 = vunpack.c.l.b16 %v523
        %v1632 = vunpack.c.l.b16 %v524
        %v1633 = vunpack.c.l.b16 %v525
        %v1634 = vunpack.c.l.b16 %v526
        %v1635 = vunpack.c.l.b16 %v527
        %v1636 = vunpack.c.l.b16 %v528
        %v1637 = vunpack.c.l.b16 %v529
        %v1638 = vunpack.c.l.b16 %v530
        %v1639 = vunpack.c.l.b16 %v531
        %v1640 = vunpack.c.l.b16 %v532
        %v1641 = vunpack.c.l.b16 %v533
        %v1642 = vunpack.c.l.b16 %v534
        %v1643 = vunpack.c.l.b16 %v535
        %v1644 = vunpack.c.l.b16 %v536
        %v1645 = vunpack.c.l.b16 %v537
        %v1646 = vpack.c.b16 %v1615, %v1614
        %v1647 = vpack.c.b16 %v1617, %v1616
        %v1648 = vpack.c.b16 %v1619, %v1618
        %v1649 = vpack.c.b16 %v1621, %v1620
        %v1650 = vpack.c.b16 %v1623, %v1622
        %v1651 = vpack.c.b16 %v1625, %v1624
        %v1652 = vpack.c.b16 %v1627, %v1626
        %v1653 = vpack.c.b16 %v1629, %v1628
        %v1654 = vpack.c.b16 %v1631, %v1630
        %v1655 = vpack.c.b16 %v1633, %v1632
        %v1656 = vpack.c.b16 %v1635, %v1634
        %v1657 = vpack.c.b16 %v1637, %v1636
        %v1658 = vpack.c.b16 %v1639, %v1638
        %v1659 = vpack.c.b16 %v1641, %v1640
        %v1660 = vpack.c.b16 %v1643, %v1642
        %v1661 = vpack.c.b16 %v1645, %v1644
        %1678 = vmatprep.subr.bf16.mxu0 0
        %1679 = vmatpush1.bf16.msra.mxu0 %v1646
        %1680 = vmatprep.subr.bf16.mxu0 0
        %1681 = vmatpush1.bf16.msra.mxu0 %v1647
        %1682 = vmatprep.subr.bf16.mxu0 0
        %1683 = vmatpush1.bf16.msra.mxu0 %v1648
        %1684 = vmatprep.subr.bf16.mxu0 0
        %1685 = vmatpush1.bf16.msra.mxu0 %v1649
        %1686 = vmatprep.subr.bf16.mxu0 0
        %1687 = vmatpush1.bf16.msra.mxu0 %v1650
        %1688 = vmatprep.subr.bf16.mxu0 0
        %1689 = vmatpush1.bf16.msra.mxu0 %v1651
        %1690 = vmatprep.subr.bf16.mxu0 0
        %1691 = vmatpush1.bf16.msra.mxu0 %v1652
        %1692 = vmatprep.subr.bf16.mxu0 0
        %1693 = vmatpush1.bf16.msra.mxu0 %v1653
        %1694 = vmatprep.subr.bf16.mxu0 0
        %1695 = vmatpush1.bf16.msra.mxu0 %v1654
        %1696 = vmatprep.subr.bf16.mxu0 0
        %1697 = vmatpush1.bf16.msra.mxu0 %v1655
        %1698 = vmatprep.subr.bf16.mxu0 0
        %1699 = vmatpush1.bf16.msra.mxu0 %v1656
        %1700 = vmatprep.subr.bf16.mxu0 0
        %1701 = vmatpush1.bf16.msra.mxu0 %v1657
        %1702 = vmatprep.subr.bf16.mxu0 0
        %1703 = vmatpush1.bf16.msra.mxu0 %v1658
        %1704 = vmatprep.subr.bf16.mxu0 0
        %1705 = vmatpush1.bf16.msra.mxu0 %v1659
        %1706 = vmatprep.subr.bf16.mxu0 0
        %1707 = vmatpush1.bf16.msra.mxu0 %v1660
        %1708 = vmatprep.subr.bf16.mxu0 0
        %1709 = vmatpush1.bf16.msra.mxu0 %v1661
        %1710 = vmatprep.mubr.bf16.mxu0 %v1208
        %1711 = vmatmul.mubr.bf16.gmra.mrb[0].mxu0 %v1207
        %v1712 = vpop.f32.mrb[0].mxu0
        %v1713 = vadd.f32 %v1576, %v1712
        %v1714 = vpop.f32.mrb[0].mxu0
        %v1715 = vpop.f32.mrb[0].mxu0
        %v1716 = vadd.f32 %v1579, %v1715
        %v1717 = vpop.f32.mrb[0].mxu0
        %1718 = vdwg.mxu0
        %s1719 = scalar_lea.vmem %s437, 16
        %v1720 = vld [vmem:[%s1719] sm:$0xf]
        %v1721 = vld [vmem:[%s1719 + $0x4] sm:$0xf]
        %v1722 = vld [vmem:[%s1719 + $0x8] sm:$0xf]
        %v1723 = vld [vmem:[%s1719 + $0xc] sm:$0xf]
        %v1724 = vunpack.c.l.bf16 %v1720
        %v1725 = vunpack.c.l.bf16 %v1721
        %v1726 = vunpack.c.l.bf16 %v1722
        %v1727 = vunpack.c.l.bf16 %v1723
        %v1732 = vcombine.low %v797, %v799
        %v1733 = vcombine.high %v797, %v799
        %v1734 = vcombine.low %v801, %v803
        %v1735 = vcombine.high %v801, %v803
        %v1741 = vunpack.c.l.s4 1935823168
        %v1742 = vunpack.c.0.s8 %v1741
        %v1743 = vlaneseq
        %v1744 = vshrl.u32 %v1743, 7
        %v1745 = vsub.s32 %v1742, %v1744
        %v1746 = vrot.slane %v1732, %v1745
        %v1748 = vunpack.c.l.s4 1935823168
        %v1749 = vunpack.c.0.s8 %v1748
        %v1750 = vlaneseq
        %v1751 = vshrl.u32 %v1750, 7
        %v1752 = vsub.s32 %v1749, %v1751
        %v1753 = vrot.slane %v1733, %v1752
        %v1755 = vunpack.c.l.s4 1935823168
        %v1756 = vunpack.c.0.s8 %v1755
        %v1757 = vlaneseq
        %v1758 = vshrl.u32 %v1757, 7
        %v1759 = vsub.s32 %v1756, %v1758
        %v1760 = vrot.slane %v1734, %v1759
        %v1762 = vunpack.c.l.s4 1935823168
        %v1763 = vunpack.c.0.s8 %v1762
        %v1764 = vlaneseq
        %v1765 = vshrl.u32 %v1764, 7
        %v1766 = vsub.s32 %v1763, %v1765
        %v1767 = vrot.slane %v1735, %v1766
        %v1768 = vpack.c.bf16 %v1753, %v1746
        %v1769 = vpack.c.bf16 %v1767, %v1760
        %v1770 = vpack.c.bf16 %v907, %v903
        %v1771 = vpack.c.bf16 %v960, %v956
        %1772 = vmatprep.subr.bf16.mxu0 0
        %1773 = vmatpush1.bf16.xpose.msra.mxu0 %v1770
        %1774 = vmatprep.subr.bf16.mxu0 0
        %1775 = vmatpush1.bf16.xpose.msra.mxu0 0
        %1776 = vmatprep.subr.bf16.mxu0 0
        %1777 = vmatpush1.bf16.xpose.msra.mxu0 0
        %1778 = vmatprep.subr.bf16.mxu0 0
        %1779 = vmatpush1.bf16.xpose.msra.mxu0 0
        %1780 = vmatprep.subr.bf16.mxu0 0
        %1781 = vmatpush1.bf16.xpose.msra.mxu0 0
        %1782 = vmatprep.subr.bf16.mxu0 0
        %1783 = vmatpush1.bf16.xpose.msra.mxu0 0
        %1784 = vmatprep.subr.bf16.mxu0 0
        %1785 = vmatpush1.bf16.xpose.msra.mxu0 0
        %1786 = vmatprep.subr.bf16.mxu0 0
        %1787 = vmatpush1.bf16.xpose.msra.mxu0 0
        %1788 = vmatprep.subr.bf16.mxu0 0
        %1789 = vmatpush1.bf16.xpose.msra.mxu0 0
        %1790 = vmatprep.subr.bf16.mxu0 0
        %1791 = vmatpush1.bf16.xpose.msra.mxu0 0
        %1792 = vmatprep.subr.bf16.mxu0 0
        %1793 = vmatpush1.bf16.xpose.msra.mxu0 0
        %1794 = vmatprep.subr.bf16.mxu0 0
        %1795 = vmatpush1.bf16.xpose.msra.mxu0 0
        %1796 = vmatprep.subr.bf16.mxu0 0
        %1797 = vmatpush1.bf16.xpose.msra.mxu0 0
        %1798 = vmatprep.subr.bf16.mxu0 0
        %1799 = vmatpush1.bf16.xpose.msra.mxu0 0
        %1800 = vmatprep.subr.bf16.mxu0 0
        %1801 = vmatpush1.bf16.xpose.msra.mxu0 0
        %1802 = vmatprep.subr.bf16.mxu0 0
        %1803 = vmatpush1.bf16.xpose.msra.mxu0 0
        %1804 = vmatprep.mubr.bf16.mxu0 0
        %1805 = vmatmul.mubr.bf16.gmra.mrb[0].mxu0 %v1768
        %v1806 = vpop.f32.mrb[0].mxu0
        %v1807 = vadd.f32 %v1724, %v1806
        %v1808 = vpop.f32.mrb[0].mxu0
        %v1809 = vpop.f32.mrb[0].mxu0
        %v1810 = vadd.f32 %v1725, %v1809
        %v1811 = vpop.f32.mrb[0].mxu0
        %1812 = vmatprep.mubr.bf16.mxu0 0
        %1813 = vmatmul.mubr.bf16.gmra.mrb[0].mxu0 %v1769
        %v1814 = vpop.f32.mrb[0].mxu0
        %v1815 = vadd.f32 %v1726, %v1814
        %v1816 = vpop.f32.mrb[0].mxu0
        %v1817 = vpop.f32.mrb[0].mxu0
        %v1818 = vadd.f32 %v1727, %v1817
        %v1819 = vpop.f32.mrb[0].mxu0
        %1820 = vdwg.mxu0
        %v1821 = vsel %vm1065, %v1807, -inf
        %1822 = vmax.xlane.f32.xlu0 %v1821
        %v1823 = vpop.xlane.xlu0 %1822
        %v1824 = vsel %vm1065, %v1810, -inf
        %1825 = vmax.xlane.f32.xlu0 %v1824
        %v1826 = vpop.xlane.xlu0 %1825
        %v1827 = vsel %vm1065, %v1815, -inf
        %1828 = vmax.xlane.f32.xlu0 %v1827
        %v1829 = vpop.xlane.xlu0 %1828
        %v1830 = vsel %vm1065, %v1818, -inf
        %1831 = vmax.xlane.f32.xlu0 %v1830
        %v1832 = vpop.xlane.xlu0 %1831
        %v1833 = vsub.f32 %v1807, %v1823
        %v1834 = vsub.f32 %v1810, %v1826
        %v1835 = vsub.f32 %v1815, %v1829
        %v1836 = vsub.f32 %v1818, %v1832
        %v1837 = vmul.f32 %v1833, 1.442695
        %v1838 = vpow.pop %v1837
        %v1839 = vmul.f32 %v1834, 1.442695
        %v1840 = vpow.pop %v1839
        %v1841 = vmul.f32 %v1835, 1.442695
        %v1842 = vpow.pop %v1841
        %v1843 = vmul.f32 %v1836, 1.442695
        %v1844 = vpow.pop %v1843
        %v1845 = vsel %vm1065, %v1838, 0.0
        %1846 = vadd.xlane.f32.xlu0 %v1845
        %v1847 = vpop.xlane.xlu0 %1846
        %v1848 = vsel %vm1065, %v1840, 0.0
        %1849 = vadd.xlane.f32.xlu0 %v1848
        %v1850 = vpop.xlane.xlu0 %1849
        %v1851 = vsel %vm1065, %v1842, 0.0
        %1852 = vadd.xlane.f32.xlu0 %v1851
        %v1853 = vpop.xlane.xlu0 %1852
        %v1854 = vsel %vm1065, %v1844, 0.0
        %1855 = vadd.xlane.f32.xlu0 %v1854
        %v1856 = vpop.xlane.xlu0 %1855
        %v1857 = vrcp.pop %v1847
        %v1858 = vrcp.pop %v1850
        %v1859 = vrcp.pop %v1853
        %v1860 = vrcp.pop %v1856
        %v1861 = vmul.f32 %v1838, %v1857
        %v1862 = vmul.f32 %v1840, %v1858
        %v1863 = vmul.f32 %v1842, %v1859
        %v1864 = vmul.f32 %v1844, %v1860
        %v1865 = vpack.c.bf16 %v1862, %v1861
        %v1866 = vpack.c.bf16 %v1864, %v1863
        %v1868 = vsel %vm1065, %v1865, 0
        %v1871 = vsel %vm1065, %v1866, 0
        %1873 = vmatprep.subr.bf16.mxu0 0
        %1874 = vmatpush1.bf16.msra.mxu0 %v1771
        %1875 = vmatprep.subr.bf16.mxu0 0
        %1876 = vmatpush1.bf16.msra.mxu0 0
        %1877 = vmatprep.subr.bf16.mxu0 0
        %1878 = vmatpush1.bf16.msra.mxu0 0
        %1879 = vmatprep.subr.bf16.mxu0 0
        %1880 = vmatpush1.bf16.msra.mxu0 0
        %1881 = vmatprep.subr.bf16.mxu0 0
        %1882 = vmatpush1.bf16.msra.mxu0 0
        %1883 = vmatprep.subr.bf16.mxu0 0
        %1884 = vmatpush1.bf16.msra.mxu0 0
        %1885 = vmatprep.subr.bf16.mxu0 0
        %1886 = vmatpush1.bf16.msra.mxu0 0
        %1887 = vmatprep.subr.bf16.mxu0 0
        %1888 = vmatpush1.bf16.msra.mxu0 0
        %1889 = vmatprep.subr.bf16.mxu0 0
        %1890 = vmatpush1.bf16.msra.mxu0 0
        %1891 = vmatprep.subr.bf16.mxu0 0
        %1892 = vmatpush1.bf16.msra.mxu0 0
        %1893 = vmatprep.subr.bf16.mxu0 0
        %1894 = vmatpush1.bf16.msra.mxu0 0
        %1895 = vmatprep.subr.bf16.mxu0 0
        %1896 = vmatpush1.bf16.msra.mxu0 0
        %1897 = vmatprep.subr.bf16.mxu0 0
        %1898 = vmatpush1.bf16.msra.mxu0 0
        %1899 = vmatprep.subr.bf16.mxu0 0
        %1900 = vmatpush1.bf16.msra.mxu0 0
        %1901 = vmatprep.subr.bf16.mxu0 0
        %1902 = vmatpush1.bf16.msra.mxu0 0
        %1903 = vmatprep.subr.bf16.mxu0 0
        %1904 = vmatpush1.bf16.msra.mxu0 0
        %1905 = vmatprep.mubr.bf16.mxu0 0
        %1906 = vmatmul.mubr.bf16.gmra.mrb[0].mxu0 %v1868
        %v1907 = vpop.f32.mrb[0].mxu0
        %v1908 = vadd.f32 0.0, %v1907
        %v1909 = vpop.f32.mrb[0].mxu0
        %v1910 = vpop.f32.mrb[0].mxu0
        %v1911 = vadd.f32 0.0, %v1910
        %v1912 = vpop.f32.mrb[0].mxu0
        %1913 = vmatprep.mubr.bf16.mxu0 0
        %1914 = vmatmul.mubr.bf16.gmra.mrb[0].mxu0 %v1871
        %v1915 = vpop.f32.mrb[0].mxu0
        %v1916 = vadd.f32 0.0, %v1915
        %v1917 = vpop.f32.mrb[0].mxu0
        %v1918 = vpop.f32.mrb[0].mxu0
        %v1919 = vadd.f32 0.0, %v1918
        %v1920 = vpop.f32.mrb[0].mxu0
        %1921 = vdwg.mxu0
        %v1923 = vunpack.c.l.s4 1966171168
        %v1924 = vunpack.c.0.s8 %v1923
        %v1925 = vlaneseq
        %v1926 = vshrl.u32 %v1925, 7
        %v1927 = vsub.s32 %v1924, %v1926
        %v1928 = vrot.slane %v1908, %v1927
        %v1930 = vunpack.c.l.s4 1966171168
        %v1931 = vunpack.c.0.s8 %v1930
        %v1932 = vlaneseq
        %v1933 = vshrl.u32 %v1932, 7
        %v1934 = vsub.s32 %v1931, %v1933
        %v1935 = vrot.slane %v1911, %v1934
        %v1937 = vunpack.c.l.s4 1966171168
        %v1938 = vunpack.c.0.s8 %v1937
        %v1939 = vlaneseq
        %v1940 = vshrl.u32 %v1939, 7
        %v1941 = vsub.s32 %v1938, %v1940
        %v1942 = vrot.slane %v1916, %v1941
        %v1944 = vunpack.c.l.s4 1966171168
        %v1945 = vunpack.c.0.s8 %v1944
        %v1946 = vlaneseq
        %v1947 = vshrl.u32 %v1946, 7
        %v1948 = vsub.s32 %v1945, %v1947
        %v1949 = vrot.slane %v1919, %v1948
        %v1954 = vcombine.low %v1928, %v1935
        %v1955 = vcombine.high %v1928, %v1935
        %v1956 = vcombine.low %v1942, %v1949
        %v1957 = vcombine.high %v1942, %v1949
        %v1962 = vpack.c.bf16 %v1956, %v1954
        %v1963 = vpack.c.bf16 %v1957, %v1955
        %v1968 = vcombine.low %v850, %v852
        %v1969 = vcombine.high %v850, %v852
        %v1970 = vcombine.low %v854, %v856
        %v1971 = vcombine.high %v854, %v856
        %v1977 = vunpack.c.l.s4 1935823168
        %v1978 = vunpack.c.0.s8 %v1977
        %v1979 = vlaneseq
        %v1980 = vshrl.u32 %v1979, 7
        %v1981 = vsub.s32 %v1978, %v1980
        %v1982 = vrot.slane %v1968, %v1981
        %v1984 = vunpack.c.l.s4 1935823168
        %v1985 = vunpack.c.0.s8 %v1984
        %v1986 = vlaneseq
        %v1987 = vshrl.u32 %v1986, 7
        %v1988 = vsub.s32 %v1985, %v1987
        %v1989 = vrot.slane %v1969, %v1988
        %v1991 = vunpack.c.l.s4 1935823168
        %v1992 = vunpack.c.0.s8 %v1991
        %v1993 = vlaneseq
        %v1994 = vshrl.u32 %v1993, 7
        %v1995 = vsub.s32 %v1992, %v1994
        %v1996 = vrot.slane %v1970, %v1995
        %v1998 = vunpack.c.l.s4 1935823168
        %v1999 = vunpack.c.0.s8 %v1998
        %v2000 = vlaneseq
        %v2001 = vshrl.u32 %v2000, 7
        %v2002 = vsub.s32 %v1999, %v2001
        %v2003 = vrot.slane %v1971, %v2002
        %v2004 = vpack.c.bf16 %v1989, %v1982
        %v2005 = vpack.c.bf16 %v2003, %v1996
        %v2006 = vpack.c.bf16 %v909, %v905
        %v2007 = vpack.c.bf16 %v962, %v958
        %2008 = vmatprep.subr.bf16.mxu0 0
        %2009 = vmatpush1.bf16.xpose.msra.mxu0 %v2006
        %2010 = vmatprep.subr.bf16.mxu0 0
        %2011 = vmatpush1.bf16.xpose.msra.mxu0 0
        %2012 = vmatprep.subr.bf16.mxu0 0
        %2013 = vmatpush1.bf16.xpose.msra.mxu0 0
        %2014 = vmatprep.subr.bf16.mxu0 0
        %2015 = vmatpush1.bf16.xpose.msra.mxu0 0
        %2016 = vmatprep.subr.bf16.mxu0 0
        %2017 = vmatpush1.bf16.xpose.msra.mxu0 0
        %2018 = vmatprep.subr.bf16.mxu0 0
        %2019 = vmatpush1.bf16.xpose.msra.mxu0 0
        %2020 = vmatprep.subr.bf16.mxu0 0
        %2021 = vmatpush1.bf16.xpose.msra.mxu0 0
        %2022 = vmatprep.subr.bf16.mxu0 0
        %2023 = vmatpush1.bf16.xpose.msra.mxu0 0
        %2024 = vmatprep.subr.bf16.mxu0 0
        %2025 = vmatpush1.bf16.xpose.msra.mxu0 0
        %2026 = vmatprep.subr.bf16.mxu0 0
        %2027 = vmatpush1.bf16.xpose.msra.mxu0 0
        %2028 = vmatprep.subr.bf16.mxu0 0
        %2029 = vmatpush1.bf16.xpose.msra.mxu0 0
        %2030 = vmatprep.subr.bf16.mxu0 0
        %2031 = vmatpush1.bf16.xpose.msra.mxu0 0
        %2032 = vmatprep.subr.bf16.mxu0 0
        %2033 = vmatpush1.bf16.xpose.msra.mxu0 0
        %2034 = vmatprep.subr.bf16.mxu0 0
        %2035 = vmatpush1.bf16.xpose.msra.mxu0 0
        %2036 = vmatprep.subr.bf16.mxu0 0
        %2037 = vmatpush1.bf16.xpose.msra.mxu0 0
        %2038 = vmatprep.subr.bf16.mxu0 0
        %2039 = vmatpush1.bf16.xpose.msra.mxu0 0
        %2040 = vmatprep.mubr.bf16.mxu0 0
        %2041 = vmatmul.mubr.bf16.gmra.mrb[0].mxu0 %v2004
        %v2042 = vpop.f32.mrb[0].mxu0
        %v2043 = vadd.f32 %v1724, %v2042
        %v2044 = vpop.f32.mrb[0].mxu0
        %v2045 = vpop.f32.mrb[0].mxu0
        %v2046 = vadd.f32 %v1725, %v2045
        %v2047 = vpop.f32.mrb[0].mxu0
        %2048 = vmatprep.mubr.bf16.mxu0 0
        %2049 = vmatmul.mubr.bf16.gmra.mrb[0].mxu0 %v2005
        %v2050 = vpop.f32.mrb[0].mxu0
        %v2051 = vadd.f32 %v1726, %v2050
        %v2052 = vpop.f32.mrb[0].mxu0
        %v2053 = vpop.f32.mrb[0].mxu0
        %v2054 = vadd.f32 %v1727, %v2053
        %v2055 = vpop.f32.mrb[0].mxu0
        %2056 = vdwg.mxu0
        %v2057 = vsel %vm1065, %v2043, -inf
        %2058 = vmax.xlane.f32.xlu0 %v2057
        %v2059 = vpop.xlane.xlu0 %2058
        %v2060 = vsel %vm1065, %v2046, -inf
        %2061 = vmax.xlane.f32.xlu0 %v2060
        %v2062 = vpop.xlane.xlu0 %2061
        %v2063 = vsel %vm1065, %v2051, -inf
        %2064 = vmax.xlane.f32.xlu0 %v2063
        %v2065 = vpop.xlane.xlu0 %2064
        %v2066 = vsel %vm1065, %v2054, -inf
        %2067 = vmax.xlane.f32.xlu0 %v2066
        %v2068 = vpop.xlane.xlu0 %2067
        %v2069 = vsub.f32 %v2043, %v2059
        %v2070 = vsub.f32 %v2046, %v2062
        %v2071 = vsub.f32 %v2051, %v2065
        %v2072 = vsub.f32 %v2054, %v2068
        %v2073 = vmul.f32 %v2069, 1.442695
        %v2074 = vpow.pop %v2073
        %v2075 = vmul.f32 %v2070, 1.442695
        %v2076 = vpow.pop %v2075
        %v2077 = vmul.f32 %v2071, 1.442695
        %v2078 = vpow.pop %v2077
        %v2079 = vmul.f32 %v2072, 1.442695
        %v2080 = vpow.pop %v2079
        %v2081 = vsel %vm1065, %v2074, 0.0
        %2082 = vadd.xlane.f32.xlu0 %v2081
        %v2083 = vpop.xlane.xlu0 %2082
        %v2084 = vsel %vm1065, %v2076, 0.0
        %2085 = vadd.xlane.f32.xlu0 %v2084
        %v2086 = vpop.xlane.xlu0 %2085
        %v2087 = vsel %vm1065, %v2078, 0.0
        %2088 = vadd.xlane.f32.xlu0 %v2087
        %v2089 = vpop.xlane.xlu0 %2088
        %v2090 = vsel %vm1065, %v2080, 0.0
        %2091 = vadd.xlane.f32.xlu0 %v2090
        %v2092 = vpop.xlane.xlu0 %2091
        %v2093 = vrcp.pop %v2083
        %v2094 = vrcp.pop %v2086
        %v2095 = vrcp.pop %v2089
        %v2096 = vrcp.pop %v2092
        %v2097 = vmul.f32 %v2074, %v2093
        %v2098 = vmul.f32 %v2076, %v2094
        %v2099 = vmul.f32 %v2078, %v2095
        %v2100 = vmul.f32 %v2080, %v2096
        %v2101 = vpack.c.bf16 %v2098, %v2097
        %v2102 = vpack.c.bf16 %v2100, %v2099
        %v2104 = vsel %vm1065, %v2101, 0
        %v2107 = vsel %vm1065, %v2102, 0
        %2109 = vmatprep.subr.bf16.mxu0 0
        %2110 = vmatpush1.bf16.msra.mxu0 %v2007
        %2111 = vmatprep.subr.bf16.mxu0 0
        %2112 = vmatpush1.bf16.msra.mxu0 0
        %2113 = vmatprep.subr.bf16.mxu0 0
        %2114 = vmatpush1.bf16.msra.mxu0 0
        %2115 = vmatprep.subr.bf16.mxu0 0
        %2116 = vmatpush1.bf16.msra.mxu0 0
        %2117 = vmatprep.subr.bf16.mxu0 0
        %2118 = vmatpush1.bf16.msra.mxu0 0
        %2119 = vmatprep.subr.bf16.mxu0 0
        %2120 = vmatpush1.bf16.msra.mxu0 0
        %2121 = vmatprep.subr.bf16.mxu0 0
        %2122 = vmatpush1.bf16.msra.mxu0 0
        %2123 = vmatprep.subr.bf16.mxu0 0
        %2124 = vmatpush1.bf16.msra.mxu0 0
        %2125 = vmatprep.subr.bf16.mxu0 0
        %2126 = vmatpush1.bf16.msra.mxu0 0
        %2127 = vmatprep.subr.bf16.mxu0 0
        %2128 = vmatpush1.bf16.msra.mxu0 0
        %2129 = vmatprep.subr.bf16.mxu0 0
        %2130 = vmatpush1.bf16.msra.mxu0 0
        %2131 = vmatprep.subr.bf16.mxu0 0
        %2132 = vmatpush1.bf16.msra.mxu0 0
        %2133 = vmatprep.subr.bf16.mxu0 0
        %2134 = vmatpush1.bf16.msra.mxu0 0
        %2135 = vmatprep.subr.bf16.mxu0 0
        %2136 = vmatpush1.bf16.msra.mxu0 0
        %2137 = vmatprep.subr.bf16.mxu0 0
        %2138 = vmatpush1.bf16.msra.mxu0 0
        %2139 = vmatprep.subr.bf16.mxu0 0
        %2140 = vmatpush1.bf16.msra.mxu0 0
        %2141 = vmatprep.mubr.bf16.mxu0 0
        %2142 = vmatmul.mubr.bf16.gmra.mrb[0].mxu0 %v2104
        %v2143 = vpop.f32.mrb[0].mxu0
        %v2144 = vadd.f32 0.0, %v2143
        %v2145 = vpop.f32.mrb[0].mxu0
        %v2146 = vpop.f32.mrb[0].mxu0
        %v2147 = vadd.f32 0.0, %v2146
        %v2148 = vpop.f32.mrb[0].mxu0
        %2149 = vmatprep.mubr.bf16.mxu0 0
        %2150 = vmatmul.mubr.bf16.gmra.mrb[0].mxu0 %v2107
        %v2151 = vpop.f32.mrb[0].mxu0
        %v2152 = vadd.f32 0.0, %v2151
        %v2153 = vpop.f32.mrb[0].mxu0
        %v2154 = vpop.f32.mrb[0].mxu0
        %v2155 = vadd.f32 0.0, %v2154
        %v2156 = vpop.f32.mrb[0].mxu0
        %2157 = vdwg.mxu0
        %v2159 = vunpack.c.l.s4 1966171168
        %v2160 = vunpack.c.0.s8 %v2159
        %v2161 = vlaneseq
        %v2162 = vshrl.u32 %v2161, 7
        %v2163 = vsub.s32 %v2160, %v2162
        %v2164 = vrot.slane %v2144, %v2163
        %v2166 = vunpack.c.l.s4 1966171168
        %v2167 = vunpack.c.0.s8 %v2166
        %v2168 = vlaneseq
        %v2169 = vshrl.u32 %v2168, 7
        %v2170 = vsub.s32 %v2167, %v2169
        %v2171 = vrot.slane %v2147, %v2170
        %v2173 = vunpack.c.l.s4 1966171168
        %v2174 = vunpack.c.0.s8 %v2173
        %v2175 = vlaneseq
        %v2176 = vshrl.u32 %v2175, 7
        %v2177 = vsub.s32 %v2174, %v2176
        %v2178 = vrot.slane %v2152, %v2177
        %v2180 = vunpack.c.l.s4 1966171168
        %v2181 = vunpack.c.0.s8 %v2180
        %v2182 = vlaneseq
        %v2183 = vshrl.u32 %v2182, 7
        %v2184 = vsub.s32 %v2181, %v2183
        %v2185 = vrot.slane %v2155, %v2184
        %v2190 = vcombine.low %v2164, %v2171
        %v2191 = vcombine.high %v2164, %v2171
        %v2192 = vcombine.low %v2178, %v2185
        %v2193 = vcombine.high %v2178, %v2185
        %v2198 = vpack.c.bf16 %v2192, %v2190
        %v2199 = vpack.c.bf16 %v2193, %v2191
        %2200 = vmatprep.subr.bf16.mxu0 0
        %2201 = vmatpush1.bf16.msra.mxu0 %v1509
        %2202 = vmatprep.subr.bf16.mxu0 0
        %2203 = vmatpush1.bf16.msra.mxu0 %v1510
        %2204 = vmatprep.subr.bf16.mxu0 0
        %2205 = vmatpush1.bf16.msra.mxu0 %v1511
        %2206 = vmatprep.subr.bf16.mxu0 0
        %2207 = vmatpush1.bf16.msra.mxu0 %v1512
        %2208 = vmatprep.subr.bf16.mxu0 0
        %2209 = vmatpush1.bf16.msra.mxu0 %v1513
        %2210 = vmatprep.subr.bf16.mxu0 0
        %2211 = vmatpush1.bf16.msra.mxu0 %v1514
        %2212 = vmatprep.subr.bf16.mxu0 0
        %2213 = vmatpush1.bf16.msra.mxu0 %v1515
        %2214 = vmatprep.subr.bf16.mxu0 0
        %2215 = vmatpush1.bf16.msra.mxu0 %v1516
        %2216 = vmatprep.subr.bf16.mxu0 0
        %2217 = vmatpush1.bf16.msra.mxu0 %v1517
        %2218 = vmatprep.subr.bf16.mxu0 0
        %2219 = vmatpush1.bf16.msra.mxu0 %v1518
        %2220 = vmatprep.subr.bf16.mxu0 0
        %2221 = vmatpush1.bf16.msra.mxu0 %v1519
        %2222 = vmatprep.subr.bf16.mxu0 0
        %2223 = vmatpush1.bf16.msra.mxu0 %v1520
        %2224 = vmatprep.subr.bf16.mxu0 0
        %2225 = vmatpush1.bf16.msra.mxu0 %v1521
        %2226 = vmatprep.subr.bf16.mxu0 0
        %2227 = vmatpush1.bf16.msra.mxu0 %v1522
        %2228 = vmatprep.subr.bf16.mxu0 0
        %2229 = vmatpush1.bf16.msra.mxu0 %v1523
        %2230 = vmatprep.subr.bf16.mxu0 0
        %2231 = vmatpush1.bf16.msra.mxu0 %v1524
        %2232 = vmatprep.mubr.bf16.mxu0 %v2199
        %2233 = vmatmul.mubr.bf16.gmra.mrb[0].mxu0 %v2198
        %v2234 = vpop.f32.mrb[0].mxu0
        %v2235 = vadd.f32 0.0, %v2234
        %v2236 = vpop.f32.mrb[0].mxu0
        %v2237 = vpop.f32.mrb[0].mxu0
        %v2238 = vadd.f32 0.0, %v2237
        %v2239 = vpop.f32.mrb[0].mxu0
        %2240 = vdwg.mxu0
        %2241 = vmatprep.subr.bf16.mxu0 0
        %2242 = vmatpush1.bf16.msra.mxu0 %v1646
        %2243 = vmatprep.subr.bf16.mxu0 0
        %2244 = vmatpush1.bf16.msra.mxu0 %v1647
        %2245 = vmatprep.subr.bf16.mxu0 0
        %2246 = vmatpush1.bf16.msra.mxu0 %v1648
        %2247 = vmatprep.subr.bf16.mxu0 0
        %2248 = vmatpush1.bf16.msra.mxu0 %v1649
        %2249 = vmatprep.subr.bf16.mxu0 0
        %2250 = vmatpush1.bf16.msra.mxu0 %v1650
        %2251 = vmatprep.subr.bf16.mxu0 0
        %2252 = vmatpush1.bf16.msra.mxu0 %v1651
        %2253 = vmatprep.subr.bf16.mxu0 0
        %2254 = vmatpush1.bf16.msra.mxu0 %v1652
        %2255 = vmatprep.subr.bf16.mxu0 0
        %2256 = vmatpush1.bf16.msra.mxu0 %v1653
        %2257 = vmatprep.subr.bf16.mxu0 0
        %2258 = vmatpush1.bf16.msra.mxu0 %v1654
        %2259 = vmatprep.subr.bf16.mxu0 0
        %2260 = vmatpush1.bf16.msra.mxu0 %v1655
        %2261 = vmatprep.subr.bf16.mxu0 0
        %2262 = vmatpush1.bf16.msra.mxu0 %v1656
        %2263 = vmatprep.subr.bf16.mxu0 0
        %2264 = vmatpush1.bf16.msra.mxu0 %v1657
        %2265 = vmatprep.subr.bf16.mxu0 0
        %2266 = vmatpush1.bf16.msra.mxu0 %v1658
        %2267 = vmatprep.subr.bf16.mxu0 0
        %2268 = vmatpush1.bf16.msra.mxu0 %v1659
        %2269 = vmatprep.subr.bf16.mxu0 0
        %2270 = vmatpush1.bf16.msra.mxu0 %v1660
        %2271 = vmatprep.subr.bf16.mxu0 0
        %2272 = vmatpush1.bf16.msra.mxu0 %v1661
        %2273 = vmatprep.mubr.bf16.mxu0 %v1963
        %2274 = vmatmul.mubr.bf16.gmra.mrb[0].mxu0 %v1962
        %v2275 = vpop.f32.mrb[0].mxu0
        %v2276 = vadd.f32 %v2235, %v2275
        %v2277 = vpop.f32.mrb[0].mxu0
        %v2278 = vpop.f32.mrb[0].mxu0
        %v2279 = vadd.f32 %v2238, %v2278
        %v2280 = vpop.f32.mrb[0].mxu0
        %2281 = vdwg.mxu0
        %v2282 = vadd.f32 %v486, %v1713
        %v2283 = vadd.f32 %v487, %v1716
        %v2284 = vadd.f32 %v488, %v2276
        %v2285 = vadd.f32 %v489, %v2279
        %v2286 = vlaneseq
        %v2287 = vshrl.u32 %v2286, 7
        %v2288 = vsub.s32 2, %v2287
        %v2289 = vrot.slane %v582, %v2288
        %v2290 = vadd.f32 %v2282, %v2289
        %v2291 = vadd.f32 %v2283, %v2289
        %v2292 = vadd.f32 %v2284, %v2289
        %v2293 = vadd.f32 %v2285, %v2289
        %v2294 = vsel %vm594, %v2290, 0.0
        %2295 = vadd.xlane.f32.xlu0 %v2294
        %v2296 = vpop.xlane.xlu0 %2295
        %v2297 = vsel %vm594, %v2291, 0.0
        %2298 = vadd.xlane.f32.xlu0 %v2297
        %v2299 = vpop.xlane.xlu0 %2298
        %v2300 = vsel %vm594, %v2292, 0.0
        %2301 = vadd.xlane.f32.xlu0 %v2300
        %v2302 = vpop.xlane.xlu0 %2301
        %v2303 = vsel %vm594, %v2293, 0.0
        %2304 = vadd.xlane.f32.xlu0 %v2303
        %v2305 = vpop.xlane.xlu0 %2304
        %v2306 = vmul.f32 %v2296, %v607
        %v2307 = vmul.f32 %v2299, %v607
        %v2308 = vmul.f32 %v2302, %v607
        %v2309 = vmul.f32 %v2305, %v607
        %v2310 = vsub.f32 %v2290, %v2306
        %v2311 = vsub.f32 %v2291, %v2307
        %v2312 = vsub.f32 %v2292, %v2308
        %v2313 = vsub.f32 %v2293, %v2309
        %v2314 = vmul.f32 %v2310, %v2310
        %v2315 = vmul.f32 %v2311, %v2311
        %v2316 = vmul.f32 %v2312, %v2312
        %v2317 = vmul.f32 %v2313, %v2313
        %v2318 = vsel %vm594, %v2314, 0.0
        %2319 = vadd.xlane.f32.xlu0 %v2318
        %v2320 = vpop.xlane.xlu0 %2319
        %v2321 = vsel %vm594, %v2315, 0.0
        %2322 = vadd.xlane.f32.xlu0 %v2321
        %v2323 = vpop.xlane.xlu0 %2322
        %v2324 = vsel %vm594, %v2316, 0.0
        %2325 = vadd.xlane.f32.xlu0 %v2324
        %v2326 = vpop.xlane.xlu0 %2325
        %v2327 = vsel %vm594, %v2317, 0.0
        %2328 = vadd.xlane.f32.xlu0 %v2327
        %v2329 = vpop.xlane.xlu0 %2328
        %v2330 = vmul.f32 %v2320, %v607
        %v2331 = vmul.f32 %v2323, %v607
        %v2332 = vmul.f32 %v2326, %v607
        %v2333 = vmul.f32 %v2329, %v607
        %v2334 = vadd.f32 %v2330, 1e-06
        %v2335 = vadd.f32 %v2331, 1e-06
        %v2336 = vadd.f32 %v2332, 1e-06
        %v2337 = vadd.f32 %v2333, 1e-06
        %v2338 = vrsqrt.pop %v2334
        %v2339 = vrsqrt.pop %v2335
        %v2340 = vrsqrt.pop %v2336
        %v2341 = vrsqrt.pop %v2337
        %v2342 = vmul.f32 %v2310, %v2338
        %v2343 = vmul.f32 %v2311, %v2339
        %v2344 = vmul.f32 %v2312, %v2340
        %v2345 = vmul.f32 %v2313, %v2341
        %v2346 = vlaneseq
        %v2347 = vshrl.u32 %v2346, 7
        %v2348 = vsub.s32 3, %v2347
        %v2349 = vrot.slane %v582, %v2348
        %v2350 = vmul.f32 %v2342, %v2349
        %v2351 = vmul.f32 %v2343, %v2349
        %v2352 = vmul.f32 %v2344, %v2349
        %v2353 = vmul.f32 %v2345, %v2349
        %v2354 = vlaneseq
        %v2355 = vshrl.u32 %v2354, 7
        %v2356 = vsub.s32 4, %v2355
        %v2357 = vrot.slane %v582, %v2356
        %v2358 = vadd.f32 %v2350, %v2357
        %v2359 = vadd.f32 %v2351, %v2357
        %v2360 = vadd.f32 %v2352, %v2357
        %v2361 = vadd.f32 %v2353, %v2357
        %v2362 = vpack.c.bf16 %v2359, %v2358
        %v2363 = vpack.c.bf16 %v2361, %v2360
        %v2364 = vlaneseq
        %v2365 = vshrl.u32 %v2364, 7
        %v2366 = vsub.s32 5, %v2365
        %v2367 = vrot.slane %v582, %v2366
        %v2372 = vunpack.c.l.b16 %v570
        %v2373 = vunpack.c.l.b16 %v571
        %v2374 = vunpack.c.l.b16 %v572
        %v2375 = vunpack.c.l.b16 %v573
        %v2376 = vpack.c.b16 %v2373, %v2372
        %v2377 = vpack.c.b16 %v2375, %v2374
        %v2381 = vsel %vm594, %v2362, 0
        %v2384 = vsel %vm594, %v2363, 0
        %2386 = vmatprep.subr.bf16.mxu0 0
        %2387 = vmatpush1.bf16.msra.mxu0 %v2376
        %2388 = vmatprep.subr.bf16.mxu0 0
        %2389 = vmatpush1.bf16.msra.mxu0 %v2377
        %2390 = vmatprep.subr.bf16.mxu0 0
        %2391 = vmatpush1.bf16.msra.mxu0 0
        %2392 = vmatprep.subr.bf16.mxu0 0
        %2393 = vmatpush1.bf16.msra.mxu0 0
        %2394 = vmatprep.subr.bf16.mxu0 0
        %2395 = vmatpush1.bf16.msra.mxu0 0
        %2396 = vmatprep.subr.bf16.mxu0 0
        %2397 = vmatpush1.bf16.msra.mxu0 0
        %2398 = vmatprep.subr.bf16.mxu0 0
        %2399 = vmatpush1.bf16.msra.mxu0 0
        %2400 = vmatprep.subr.bf16.mxu0 0
        %2401 = vmatpush1.bf16.msra.mxu0 0
        %2402 = vmatprep.subr.bf16.mxu0 0
        %2403 = vmatpush1.bf16.msra.mxu0 0
        %2404 = vmatprep.subr.bf16.mxu0 0
        %2405 = vmatpush1.bf16.msra.mxu0 0
        %2406 = vmatprep.subr.bf16.mxu0 0
        %2407 = vmatpush1.bf16.msra.mxu0 0
        %2408 = vmatprep.subr.bf16.mxu0 0
        %2409 = vmatpush1.bf16.msra.mxu0 0
        %2410 = vmatprep.subr.bf16.mxu0 0
        %2411 = vmatpush1.bf16.msra.mxu0 0
        %2412 = vmatprep.subr.bf16.mxu0 0
        %2413 = vmatpush1.bf16.msra.mxu0 0
        %2414 = vmatprep.subr.bf16.mxu0 0
        %2415 = vmatpush1.bf16.msra.mxu0 0
        %2416 = vmatprep.subr.bf16.mxu0 0
        %2417 = vmatpush1.bf16.msra.mxu0 0
        %2418 = vmatprep.mubr.bf16.mxu0 0
        %2419 = vmatmul.mubr.bf16.gmra.mrb[0].mxu0 %v2381
        %v2420 = vpop.f32.mrb[0].mxu0
        %v2421 = vadd.f32 %v2367, %v2420
        %v2422 = vpop.f32.mrb[0].mxu0
        %v2423 = vpop.f32.mrb[0].mxu0
        %v2424 = vadd.f32 %v2367, %v2423
        %v2425 = vpop.f32.mrb[0].mxu0
        %2426 = vmatprep.mubr.bf16.mxu0 0
        %2427 = vmatmul.mubr.bf16.gmra.mrb[0].mxu0 %v2384
        %v2428 = vpop.f32.mrb[0].mxu0
        %v2429 = vadd.f32 %v2367, %v2428
        %v2430 = vpop.f32.mrb[0].mxu0
        %v2431 = vpop.f32.mrb[0].mxu0
        %v2432 = vadd.f32 %v2367, %v2431
        %v2433 = vpop.f32.mrb[0].mxu0
        %2434 = vdwg.mxu0
        %v2435 = vmax.f32 %v2421, 0.0
        %v2436 = vmax.f32 %v2424, 0.0
        %v2437 = vmax.f32 %v2429, 0.0
        %v2438 = vmax.f32 %v2432, 0.0
        %v2439 = vpack.c.bf16 %v2436, %v2435
        %v2440 = vpack.c.bf16 %v2438, %v2437
        %v2441 = vlaneseq
        %v2442 = vshrl.u32 %v2441, 7
        %v2443 = vsub.s32 6, %v2442
        %v2444 = vrot.slane %v582, %v2443
        %v2453 = vunpack.c.l.b16 %v574
        %v2454 = vunpack.c.l.b16 %v575
        %v2455 = vunpack.c.l.b16 %v576
        %v2456 = vunpack.c.l.b16 %v577
        %v2457 = vunpack.c.l.b16 %v578
        %v2458 = vunpack.c.l.b16 %v579
        %v2459 = vunpack.c.l.b16 %v580
        %v2460 = vunpack.c.l.b16 %v581
        %v2461 = vpack.c.b16 %v2454, %v2453
        %v2462 = vpack.c.b16 %v2456, %v2455
        %v2463 = vpack.c.b16 %v2458, %v2457
        %v2464 = vpack.c.b16 %v2460, %v2459
        %vm2469 = vcmask 523264
        %v2471 = vsel %vm2469, %v2439, 0
        %v2474 = vsel %vm2469, %v2440, 0
        %2476 = vmatprep.subr.bf16.mxu0 0
        %2477 = vmatpush1.bf16.msra.mxu0 %v2461
        %2478 = vmatprep.subr.bf16.mxu0 0
        %2479 = vmatpush1.bf16.msra.mxu0 %v2462
        %2480 = vmatprep.subr.bf16.mxu0 0
        %2481 = vmatpush1.bf16.msra.mxu0 %v2463
        %2482 = vmatprep.subr.bf16.mxu0 0
        %2483 = vmatpush1.bf16.msra.mxu0 %v2464
        %2484 = vmatprep.subr.bf16.mxu0 0
        %2485 = vmatpush1.bf16.msra.mxu0 0
        %2486 = vmatprep.subr.bf16.mxu0 0
        %2487 = vmatpush1.bf16.msra.mxu0 0
        %2488 = vmatprep.subr.bf16.mxu0 0
        %2489 = vmatpush1.bf16.msra.mxu0 0
        %2490 = vmatprep.subr.bf16.mxu0 0
        %2491 = vmatpush1.bf16.msra.mxu0 0
        %2492 = vmatprep.subr.bf16.mxu0 0
        %2493 = vmatpush1.bf16.msra.mxu0 0
        %2494 = vmatprep.subr.bf16.mxu0 0
        %2495 = vmatpush1.bf16.msra.mxu0 0
        %2496 = vmatprep.subr.bf16.mxu0 0
        %2497 = vmatpush1.bf16.msra.mxu0 0
        %2498 = vmatprep.subr.bf16.mxu0 0
        %2499 = vmatpush1.bf16.msra.mxu0 0
        %2500 = vmatprep.subr.bf16.mxu0 0
        %2501 = vmatpush1.bf16.msra.mxu0 0
        %2502 = vmatprep.subr.bf16.mxu0 0
        %2503 = vmatpush1.bf16.msra.mxu0 0
        %2504 = vmatprep.subr.bf16.mxu0 0
        %2505 = vmatpush1.bf16.msra.mxu0 0
        %2506 = vmatprep.subr.bf16.mxu0 0
        %2507 = vmatpush1.bf16.msra.mxu0 0
        %2508 = vmatprep.mubr.bf16.mxu0 0
        %2509 = vmatmul.mubr.bf16.gmra.mrb[0].mxu0 %v2471
        %v2510 = vpop.f32.mrb[0].mxu0
        %v2511 = vadd.f32 %v2444, %v2510
        %v2512 = vpop.f32.mrb[0].mxu0
        %v2513 = vpop.f32.mrb[0].mxu0
        %v2514 = vadd.f32 %v2444, %v2513
        %v2515 = vpop.f32.mrb[0].mxu0
        %2516 = vmatprep.mubr.bf16.mxu0 0
        %2517 = vmatmul.mubr.bf16.gmra.mrb[0].mxu0 %v2474
        %v2518 = vpop.f32.mrb[0].mxu0
        %v2519 = vadd.f32 %v2444, %v2518
        %v2520 = vpop.f32.mrb[0].mxu0
        %v2521 = vpop.f32.mrb[0].mxu0
        %v2522 = vadd.f32 %v2444, %v2521
        %v2523 = vpop.f32.mrb[0].mxu0
        %2524 = vdwg.mxu0
        %v2525 = vld [vmem:[%s444] sm:$0xff]
        %v2526 = vld [vmem:[%s444 + $0x8] sm:$0xff]
        %v2527 = vld [vmem:[%s444 + $0x10] sm:$0xff]
        %v2528 = vld [vmem:[%s444 + $0x18] sm:$0xff]
        %2530 = vset.pattern.permute.xlu0 0
        %2531 = vperm.xlu0 %2530, %v2525
        %v2532 = vpop.permute.xlu0 %2531
        %2535 = vset.pattern.permute.xlu0 0
        %2536 = vperm.xlu0 %2535, %v2526
        %v2537 = vpop.permute.xlu0 %2536
        %2540 = vset.pattern.permute.xlu0 0
        %2541 = vperm.xlu0 %2540, %v2527
        %v2542 = vpop.permute.xlu0 %2541
        %2545 = vset.pattern.permute.xlu0 0
        %2546 = vperm.xlu0 %2545, %v2528
        %v2547 = vpop.permute.xlu0 %2546
        %v2549 = vmul.f32 %v2511, %v2532
        %v2550 = vmul.f32 %v2514, %v2537
        %v2551 = vmul.f32 %v2519, %v2542
        %v2552 = vmul.f32 %v2522, %v2547
        %v2553 = vadd.f32 %v2290, %v2549
        %v2554 = vadd.f32 %v2291, %v2550
        %v2555 = vadd.f32 %v2292, %v2551
        %v2556 = vadd.f32 %v2293, %v2552
        %2557 = vst.msk [vmem:[%s424] sm:$0xff] %vm594, %v2553
        %2558 = vst.msk [vmem:[%s424 + $0x8] sm:$0xff] %vm594, %v2554
        %2559 = vst.msk [vmem:[%s424 + $0x10] sm:$0xff] %vm594, %v2555
        %2560 = vst.msk [vmem:[%s424 + $0x18] sm:$0xff] %vm594, %v2556
        %s2561 = sand.u32 %s250, 1
        %s2562 = scalar_lea.sflag [#allocation3], %s2561
        %s2563 = sand.u32 %s250, 1
        %s2564 = smul.addr %s2563, 32
        %s2565 = scalar_lea.vmem [#allocation2], %s2564
        // Predicated region
        $region57: #{tpu_custom_call.1} parent=51 // pred_check
          %p2566 = pneg %p260
        $region58: #{tpu_custom_call.1} parent=51 // pred_check_branch
          %2568 = sbr.rel (%p2566) target = $region60
        $region59: #{tpu_custom_call.1} parent=51 // pred_region
          %s2569 = smul.u32 2, %s26
          %s2571 = ssub.s32 512, 512
          %2572 = vsyncadd %s2562, %s2571
          %s2573 = smul.addr %s2569, 2
          %s2574 = smul.addr %s2573, 128
          %s2575 = scalar_lea.hbm %s8, %s2574
          %s2576 = sshll.u32 %s2565, 4
          %s2577 = int_to_ptr.vmem [resolvable:$true] %s2576
          %2582 = dma.vmem_to_hbm [thread:$0]  %s2577, 512, %s2575, %s2562, 128, 128, 8
        $region60: #{tpu_custom_call.1} parent=51 // pred_fallthru
          _
      $region52: #{tpu_custom_call.1} parent=5 // pred_fallthru
        _
      %p2583 = scmp.le.s32.totalorder 2, %s17
      // Predicated region
      $region61: #{tpu_custom_call.1} parent=5 // pred_check
        %p2584 = pneg %p2583
      $region62: #{tpu_custom_call.1} parent=5 // pred_check_branch
        %2586 = sbr.rel (%p2584) target = $region64
      $region63: #{tpu_custom_call.1} parent=5 // pred_region
        %s2587 = ssub.s32 %s17, 2
        // Predicated region
        $region65: #{tpu_custom_call.1} parent=63 // pred_check
          %p2588 = pneg %p266
        $region66: #{tpu_custom_call.1} parent=63 // pred_check_branch
          %2590 = sbr.rel (%p2588) target = $region68
        $region67: #{tpu_custom_call.1} parent=63 // pred_region
          %s2591 = sand.u32 %s251, 1
          %s2592 = scalar_lea.sflag [#allocation3], %s2591
          %s2593 = sand.u32 %s251, 1
          %s2594 = smul.addr %s2593, 32
          %s2595 = scalar_lea.vmem [#allocation2], %s2594
          %2596 = dma.done %s2592, 512
        $region68: #{tpu_custom_call.1} parent=63 // pred_fallthru
          _
      $region64: #{tpu_custom_call.1} parent=5 // pred_fallthru
        _
    $region6: #{tpu_custom_call.1} parent=1 // loop_footer
      %s21 = sadd.s32 1, %s17
    $region7: #{tpu_custom_call.1} parent=1 // loop_footer_branch
      %16 = sbr.rel target = $region3
    $region8: #{tpu_custom_call.1} parent=1 // loop_exit
      _
    %2597 = vsyncpa [#allocation3], 1
    %s2598 = scalar_lea.sflag [#allocation3], 1
    %2599 = vsyncpa %s2598, 1

</llo_original>
